<compile_context>
chip_gen: v7x
topology: tpu7x:2x2x1
jax: 0.10.0
libtpu: 0.0.40
codegen_flags: <defaults>
</compile_context>

<pallas_src>
import functools
import math

import jax
import jax.numpy as jnp
import numpy as np
from jax.experimental import pallas as pl
from jax.experimental.pallas import tpu as pltpu

_EPS = 1e-3                 # nn.BatchNorm2d(..., eps=0.001)
_TARGET_CHUNK_LANES = 512   # inner lane-tile width: keeps xn + 9 taps + result in vregs


# ------------------------------------------------------------------- kernel --
def _bn_relu_conv3x3_kernel(x_ref, s_ref, b_ref, w_ref, m_ref, o_ref, *,
                            H, W, imgs_per_chunk):
    """Fused BN(scale/shift) + ReLU + 3x3 conv (C_in == 1) for a block of B images.

    x_ref: (1, 1, B*P)   B images flattened back-to-back on the lane axis (P = H*W)
    s_ref: (1, 1)        BN scale  (SMEM scalar)
    b_ref: (1, 1)        BN bias   (SMEM scalar)
    w_ref: (Cout, 9)     conv taps, bf16, tap k = (dh+1)*3 + (dw+1)   (OIHW reshaped)
    m_ref: (9, bc*P)     per-tap validity masks for one chunk of bc images, bf16
    o_ref: (B, Cout, P)  output block already in NCHW order (lane-dense P)
    """
    P = H * W
    bc = imgs_per_chunk
    cp = bc * P
    n_imgs = o_ref.shape[0]
    scale = s_ref[0, 0]
    shift = b_ref[0, 0]

    # Lane-axis tiling: process bc images (cp lanes) per iteration (static unroll).
    for ci in range(n_imgs // bc):
        lo = ci * cp
        xc = x_ref[0, :, lo:lo + cp]                        # (1, cp) lane-aligned slice
        xn = jnp.maximum(xc * scale + shift, 0.0)           # BN apply + ReLU, f32 on VPU

        # 9 im2col taps via XLU lane rotations; out-of-image (and cross-image / wrap)
        # sources are zeroed by the precomputed masks.
        taps = []
        for dh in (-1, 0, 1):
            for dw in (-1, 0, 1):
                off = dh * W + dw
                taps.append(xn if off == 0 else pltpu.roll(xn, (-off) % cp, axis=1))
        # TODO(synk): collapse the 8 rolls + sublane concat into 3 grouped strided rolls
        # (pltpu.roll(..., stride=1, stride_axis=0)) once that path is validated on HW.
        patches = jnp.concatenate(taps, axis=0).astype(jnp.bfloat16) * m_ref[...]   # (9, cp)

        # (Cout, 9) @ (9, cp) on the MXU, bf16 inputs, f32 accumulation.
        res = jnp.dot(w_ref[...], patches, preferred_element_type=jnp.float32)      # (Cout, cp)

        # Scatter the chunk result into per-image lane-dense (Cout, P) output rows.
        for j in range(bc):
            o_ref[ci * bc + j] = res[:, j * P:(j + 1) * P].astype(o_ref.dtype)


# -------------------------------------------------------------------- sizing --
def _vmem_budget_bytes():
    """~60% of physical VMEM of the running generation (64 MiB v7x fallback)."""
    try:
        phys = pltpu.get_tpu_info().vmem_capacity_bytes      # 128 MiB v5e/v6e, 64 MiB v7x
    except Exception:
        phys = 64 * 1024 * 1024
    return max(32 * 1024 * 1024, (int(phys) * 3) // 5)


def _pick_blocking(N, P, cout, out_itemsize):
    """Choose images-per-grid-block B and images-per-inner-chunk bc."""
    budget = _vmem_budget_bytes()
    per_img = 2 * P * 4 + 2 * cout * P * out_itemsize        # double-buffered in + out blocks
    b_cap = max(1, (budget - (4 << 20)) // per_img)
    B = int(min(N, b_cap))
    if N >= 2:
        B = min(B, N // 2)    # keep >=2 'parallel' grid blocks: v7x shards them over 2 TCs
    B = max(B, 1)
    while N % B:              # even blocks only
        B -= 1
    bc = max(1, min(B, _TARGET_CHUNK_LANES // P)) if P <= _TARGET_CHUNK_LANES else 1
    while B % bc:
        bc -= 1
    return B, bc, int(budget)


def _conv3x3_masks(H, W):
    """(9, H*W) float32: mask[k, p] == 1 iff tap k's source pixel is in-bounds."""
    hh, ww = np.meshgrid(np.arange(H), np.arange(W), indexing="ij")
    rows = []
    for dh in (-1, 0, 1):
        for dw in (-1, 0, 1):
            valid = ((hh + dh >= 0) & (hh + dh < H) &
                     (ww + dw >= 0) & (ww + dw < W))
            rows.append(valid.reshape(-1))
    return np.stack(rows).astype(np.float32)


# ------------------------------------------------------------------ wrapper --
def dense_inception_stem_forward(x_nchw, params, *, out_dtype=jnp.float32):
    # TODO(synk): BatchNorm running_mean/running_var buffer updates (training bookkeeping)
    # are not emitted; the forward output does not depend on them.
    N, C, H, W = x_nchw.shape
    assert C == 1, "DenseInceptionStem stem conv expects a single input channel"
    P = H * W
    assert P % 128 == 0, "H*W must be lane-aligned (pad spatial dims otherwise)"
    w_mat = params["w_mat"].astype(jnp.bfloat16)
    cout = w_mat.shape[0]

    # BatchNorm2d training-mode batch statistics (C == 1 -> scalars).  Sum and
    # sum-of-squares are one fused reduction pass over x (single HBM read).
    x_f32 = x_nchw.astype(jnp.float32)
    m1 = jnp.mean(x_f32)
    m2 = jnp.mean(jnp.square(x_f32))
    var = m2 - jnp.square(m1)                       # biased, as BN normalization uses
    inv = params["gamma"][0] * jax.lax.rsqrt(var + _EPS)
    scale = jnp.reshape(inv, (1, 1))
    bias = jnp.reshape(params["beta"][0] - m1 * inv, (1, 1))

    # Blocking: B images per grid step (flattened onto lanes), bc images per inner chunk.
    B, bc, vmem_limit = _pick_blocking(N, P, cout, jnp.dtype(out_dtype).itemsize)

    x3 = x_f32.reshape(N // B, 1, B * P)            # free reshape, no transpose
    masks = jnp.asarray(np.tile(_conv3x3_masks(H, W), (1, bc)), dtype=jnp.bfloat16)

    kernel = functools.partial(_bn_relu_conv3x3_kernel, H=H, W=W, imgs_per_chunk=bc)
    out = pl.pallas_call(
        kernel,
        out_shape=jax.ShapeDtypeStruct((N, cout, P), out_dtype),
        grid=(N // B,),                             # B images per grid step
        in_specs=[
            pl.BlockSpec((1, 1, B * P), lambda g: (g, 0, 0)),
            pl.BlockSpec(memory_space=pltpu.MemorySpace.SMEM),   # BN scale scalar
            pl.BlockSpec(memory_space=pltpu.MemorySpace.SMEM),   # BN bias scalar
            pl.BlockSpec((cout, 9), lambda g: (0, 0)),           # weights (bf16), resident
            pl.BlockSpec((9, bc * P), lambda g: (0, 0)),         # chunk masks (bf16), resident
        ],
        out_specs=pl.BlockSpec((B, cout, P), lambda g: (g, 0, 0)),
        compiler_params=pltpu.CompilerParams(
            dimension_semantics=("parallel",),
            vmem_limit_bytes=vmem_limit,
        ),
    )(x3, scale, bias, w_mat, masks)

    return out.reshape(N, cout, H, W)               # free reshape back to NCHW


# ------------------------------------------------------------------- params --
def init_params(key, growth_rate):
    cout = 2 * growth_rate
    fan_in, fan_out = 1 * 3 * 3, cout * 3 * 3
    bound = math.sqrt(6.0 / (fan_in + fan_out))     # nn.init.xavier_uniform_
    w = jax.random.uniform(key, (cout, 1, 3, 3), jnp.float32, -bound, bound)
    return {
        "gamma": jnp.ones((1,), jnp.float32),       # BN affine weight (default init)
        "beta": jnp.zeros((1,), jnp.float32),       # BN affine bias
        "w_oihw": w,                                # PyTorch-layout weight (reference)
        "w_mat": w.reshape(cout, 9),                # (Cout, 9) kernel-layout taps
    }


# ---------------------------------------------------------- pure-JAX reference
def ref_forward(x, params):
    mean = jnp.mean(x, axis=(0, 2, 3), keepdims=True)
    var = jnp.var(x, axis=(0, 2, 3), keepdims=True)
    xn = (x - mean) * jax.lax.rsqrt(var + _EPS)
    xn = xn * params["gamma"].reshape(1, -1, 1, 1) + params["beta"].reshape(1, -1, 1, 1)
    xr = jnp.maximum(xn, 0.0)
    return jax.lax.conv_general_dilated(
        xr, params["w_oihw"], (1, 1), ((1, 1), (1, 1)),
        dimension_numbers=("NCHW", "OIHW", "NCHW"),
        precision=jax.lax.Precision.HIGHEST)


# --------------------------------------------------------------------- main --
if __name__ == "__main__":
    key = jax.random.PRNGKey(0)
    kx, kw = jax.random.split(key)
    N, C, H, W = 16, 1, 16, 16
    growth_rate = 16                                # Cout = 2 * growth_rate = 32
    x = jax.random.normal(kx, (N, C, H, W), jnp.float32)
    params = init_params(kw, growth_rate)

    fwd = jax.jit(dense_inception_stem_forward)
    out = jax.block_until_ready(fwd(x, params))
    assert out.shape == (N, 2 * growth_rate, H, W), out.shape

    ref = jax.block_until_ready(ref_forward(x, params))
    # Kernel matmul inputs are explicitly bf16 (same numerics as the default MXU precision
    # path, which truncates f32 operands to bf16) with f32 accumulation; the reference is
    # full-precision f32 HIGHEST, hence the relaxed tolerance.
    np.testing.assert_allclose(np.asarray(out), np.asarray(ref), atol=1e-2, rtol=1e-2)
    print("KERNEL_OK")
</pallas_src>

<mosaic_0001>
module attributes {stable_mosaic.version = 11 : i64} {
  func.func @_bn_relu_conv3x3_kernel(%arg0: i32, %arg1: memref<1x1x2048xf32, #tpu.memory_space<vmem>>, %arg2: memref<1x1xf32, #tpu.memory_space<smem>>, %arg3: memref<1x1xf32, #tpu.memory_space<smem>>, %arg4: memref<32x9xbf16, #tpu.memory_space<vmem>>, %arg5: memref<9x512xbf16, #tpu.memory_space<vmem>>, %arg6: memref<8x32x256xf32, #tpu.memory_space<vmem>>) attributes {dimension_semantics = [#tpu.dimension_semantics<parallel>], iteration_bounds = array<i64: 2>, scalar_prefetch = 0 : i64, scratch_operands = 0 : i64, tpu.core_type = #tpu.core_type<tc>, window_params = [{transform_indices = @transform_0, window_bounds = array<i64: 1, 1, 2048>}, {transform_indices = @transform_1, window_bounds = array<i64: 1, 1>}, {transform_indices = @transform_2, window_bounds = array<i64: 1, 1>}, {pipeline_mode = #tpu.pipeline_mode<synchronous>, transform_indices = @transform_3, window_bounds = array<i64: 32, 9>}, {pipeline_mode = #tpu.pipeline_mode<synchronous>, transform_indices = @transform_4, window_bounds = array<i64: 9, 512>}, {transform_indices = @transform_5, window_bounds = array<i64: 8, 32, 256>}]} {
    %c0 = arith.constant 0 : index
    %c0_0 = arith.constant 0 : index
    %0 = memref.load %arg2[%c0, %c0_0] : memref<1x1xf32, #tpu.memory_space<smem>>
    %c0_1 = arith.constant 0 : index
    %c0_2 = arith.constant 0 : index
    %1 = memref.load %arg3[%c0_1, %c0_2] : memref<1x1xf32, #tpu.memory_space<smem>>
    %c0_3 = arith.constant 0 : index
    %c0_4 = arith.constant 0 : index
    %c0_5 = arith.constant 0 : index
    %2 = vector.load %arg1[%c0_3, %c0_4, %c0_5] : memref<1x1x2048xf32, #tpu.memory_space<vmem>>, vector<1x1x512xf32>
    %3 = vector.shape_cast %2 : vector<1x1x512xf32> to vector<1x512xf32>
    %4 = vector.broadcast %0 : f32 to vector<1x512xf32>
    %5 = arith.mulf %3, %4 : vector<1x512xf32>
    %6 = vector.broadcast %1 : f32 to vector<1x512xf32>
    %7 = arith.addf %5, %6 : vector<1x512xf32>
    %cst = arith.constant 0.000000e+00 : f32
    %8 = vector.broadcast %cst : f32 to vector<1x512xf32>
    %9 = arith.maximumf %7, %8 : vector<1x512xf32>
    %c17_i32 = arith.constant 17 : i32
    %10 = tpu.dynamic_rotate %9 by %c17_i32 dim 1 : vector<1x512xf32>, i32 -> vector<1x512xf32>
    %c16_i32 = arith.constant 16 : i32
    %11 = tpu.dynamic_rotate %9 by %c16_i32 dim 1 : vector<1x512xf32>, i32 -> vector<1x512xf32>
    %c15_i32 = arith.constant 15 : i32
    %12 = tpu.dynamic_rotate %9 by %c15_i32 dim 1 : vector<1x512xf32>, i32 -> vector<1x512xf32>
    %c1_i32 = arith.constant 1 : i32
    %13 = tpu.dynamic_rotate %9 by %c1_i32 dim 1 : vector<1x512xf32>, i32 -> vector<1x512xf32>
    %c511_i32 = arith.constant 511 : i32
    %14 = tpu.dynamic_rotate %9 by %c511_i32 dim 1 : vector<1x512xf32>, i32 -> vector<1x512xf32>
    %c497_i32 = arith.constant 497 : i32
    %15 = tpu.dynamic_rotate %9 by %c497_i32 dim 1 : vector<1x512xf32>, i32 -> vector<1x512xf32>
    %c496_i32 = arith.constant 496 : i32
    %16 = tpu.dynamic_rotate %9 by %c496_i32 dim 1 : vector<1x512xf32>, i32 -> vector<1x512xf32>
    %c495_i32 = arith.constant 495 : i32
    %17 = tpu.dynamic_rotate %9 by %c495_i32 dim 1 : vector<1x512xf32>, i32 -> vector<1x512xf32>
    %18 = tpu.concatenate %10, %11, %12, %13, %9, %14, %15, %16, %17 in 0 : vector<1x512xf32>, vector<1x512xf32>, vector<1x512xf32>, vector<1x512xf32>, vector<1x512xf32>, vector<1x512xf32>, vector<1x512xf32>, vector<1x512xf32>, vector<1x512xf32> -> vector<9x512xf32>
    %19 = arith.truncf %18 : vector<9x512xf32> to vector<9x512xbf16>
    %c0_6 = arith.constant 0 : index
    %c0_7 = arith.constant 0 : index
    %20 = vector.load %arg5[%c0_6, %c0_7] : memref<9x512xbf16, #tpu.memory_space<vmem>>, vector<9x512xbf16>
    %21 = arith.mulf %19, %20 : vector<9x512xbf16>
    %c0_8 = arith.constant 0 : index
    %c0_9 = arith.constant 0 : index
    %22 = vector.load %arg4[%c0_8, %c0_9] : memref<32x9xbf16, #tpu.memory_space<vmem>>, vector<32x9xbf16>
    %cst_10 = arith.constant dense<0.000000e+00> : vector<32x512xf32>
    %23 = tpu.matmul %22, %21, %cst_10 {dimension_numbers = #tpu.dot_dimension_numbers<[1], [0], [0], [1], [0, 0, 1, 1], [], []>} : vector<32x9xbf16>, vector<9x512xbf16>, vector<32x512xf32> -> vector<32x512xf32>
    %24 = vector.extract_strided_slice %23 {offsets = [0, 0], sizes = [32, 256], strides = [1, 1]} : vector<32x512xf32> to vector<32x256xf32>
    %c0_11 = arith.constant 0 : index
    %c0_12 = arith.constant 0 : index
    %c0_13 = arith.constant 0 : index
    %25 = vector.load %arg6[%c0_11, %c0_12, %c0_13] : memref<8x32x256xf32, #tpu.memory_space<vmem>>, vector<1x32x256xf32>
    %26 = vector.shape_cast %25 : vector<1x32x256xf32> to vector<32x256xf32>
    %27 = vector.shape_cast %24 : vector<32x256xf32> to vector<1x32x256xf32>
    tpu.vector_store %arg6[%c0_11, %c0_12, %c0_13], %27 {strides = array<i32>} : memref<8x32x256xf32, #tpu.memory_space<vmem>>, vector<1x32x256xf32>,
    %28 = vector.extract_strided_slice %23 {offsets = [0, 256], sizes = [32, 256], strides = [1, 1]} : vector<32x512xf32> to vector<32x256xf32>
    %c1 = arith.constant 1 : index
    %c0_14 = arith.constant 0 : index
    %c0_15 = arith.constant 0 : index
    %29 = vector.load %arg6[%c1, %c0_14, %c0_15] : memref<8x32x256xf32, #tpu.memory_space<vmem>>, vector<1x32x256xf32>
    %30 = vector.shape_cast %29 : vector<1x32x256xf32> to vector<32x256xf32>
    %31 = vector.shape_cast %28 : vector<32x256xf32> to vector<1x32x256xf32>
    tpu.vector_store %arg6[%c1, %c0_14, %c0_15], %31 {strides = array<i32>} : memref<8x32x256xf32, #tpu.memory_space<vmem>>, vector<1x32x256xf32>,
    %c0_16 = arith.constant 0 : index
    %c0_17 = arith.constant 0 : index
    %c512 = arith.constant 512 : index
    %32 = vector.load %arg1[%c0_16, %c0_17, %c512] : memref<1x1x2048xf32, #tpu.memory_space<vmem>>, vector<1x1x512xf32>
    %33 = vector.shape_cast %32 : vector<1x1x512xf32> to vector<1x512xf32>
    %34 = vector.broadcast %0 : f32 to vector<1x512xf32>
    %35 = arith.mulf %33, %34 : vector<1x512xf32>
    %36 = vector.broadcast %1 : f32 to vector<1x512xf32>
    %37 = arith.addf %35, %36 : vector<1x512xf32>
    %cst_18 = arith.constant 0.000000e+00 : f32
    %38 = vector.broadcast %cst_18 : f32 to vector<1x512xf32>
    %39 = arith.maximumf %37, %38 : vector<1x512xf32>
    %c17_i32_19 = arith.constant 17 : i32
    %40 = tpu.dynamic_rotate %39 by %c17_i32_19 dim 1 : vector<1x512xf32>, i32 -> vector<1x512xf32>
    %c16_i32_20 = arith.constant 16 : i32
    %41 = tpu.dynamic_rotate %39 by %c16_i32_20 dim 1 : vector<1x512xf32>, i32 -> vector<1x512xf32>
    %c15_i32_21 = arith.constant 15 : i32
    %42 = tpu.dynamic_rotate %39 by %c15_i32_21 dim 1 : vector<1x512xf32>, i32 -> vector<1x512xf32>
    %c1_i32_22 = arith.constant 1 : i32
    %43 = tpu.dynamic_rotate %39 by %c1_i32_22 dim 1 : vector<1x512xf32>, i32 -> vector<1x512xf32>
    %c511_i32_23 = arith.constant 511 : i32
    %44 = tpu.dynamic_rotate %39 by %c511_i32_23 dim 1 : vector<1x512xf32>, i32 -> vector<1x512xf32>
    %c497_i32_24 = arith.constant 497 : i32
    %45 = tpu.dynamic_rotate %39 by %c497_i32_24 dim 1 : vector<1x512xf32>, i32 -> vector<1x512xf32>
    %c496_i32_25 = arith.constant 496 : i32
    %46 = tpu.dynamic_rotate %39 by %c496_i32_25 dim 1 : vector<1x512xf32>, i32 -> vector<1x512xf32>
    %c495_i32_26 = arith.constant 495 : i32
    %47 = tpu.dynamic_rotate %39 by %c495_i32_26 dim 1 : vector<1x512xf32>, i32 -> vector<1x512xf32>
    %48 = tpu.concatenate %40, %41, %42, %43, %39, %44, %45, %46, %47 in 0 : vector<1x512xf32>, vector<1x512xf32>, vector<1x512xf32>, vector<1x512xf32>, vector<1x512xf32>, vector<1x512xf32>, vector<1x512xf32>, vector<1x512xf32>, vector<1x512xf32> -> vector<9x512xf32>
    %49 = arith.truncf %48 : vector<9x512xf32> to vector<9x512xbf16>
    %c0_27 = arith.constant 0 : index
    %c0_28 = arith.constant 0 : index
    %50 = vector.load %arg5[%c0_27, %c0_28] : memref<9x512xbf16, #tpu.memory_space<vmem>>, vector<9x512xbf16>
    %51 = arith.mulf %49, %50 : vector<9x512xbf16>
    %c0_29 = arith.constant 0 : index
    %c0_30 = arith.constant 0 : index
    %52 = vector.load %arg4[%c0_29, %c0_30] : memref<32x9xbf16, #tpu.memory_space<vmem>>, vector<32x9xbf16>
    %cst_31 = arith.constant dense<0.000000e+00> : vector<32x512xf32>
    %53 = tpu.matmul %52, %51, %cst_31 {dimension_numbers = #tpu.dot_dimension_numbers<[1], [0], [0], [1], [0, 0, 1, 1], [], []>} : vector<32x9xbf16>, vector<9x512xbf16>, vector<32x512xf32> -> vector<32x512xf32>
    %54 = vector.extract_strided_slice %53 {offsets = [0, 0], sizes = [32, 256], strides = [1, 1]} : vector<32x512xf32> to vector<32x256xf32>
    %c2 = arith.constant 2 : index
    %c0_32 = arith.constant 0 : index
    %c0_33 = arith.constant 0 : index
    %55 = vector.load %arg6[%c2, %c0_32, %c0_33] : memref<8x32x256xf32, #tpu.memory_space<vmem>>, vector<1x32x256xf32>
    %56 = vector.shape_cast %55 : vector<1x32x256xf32> to vector<32x256xf32>
    %57 = vector.shape_cast %54 : vector<32x256xf32> to vector<1x32x256xf32>
    tpu.vector_store %arg6[%c2, %c0_32, %c0_33], %57 {strides = array<i32>} : memref<8x32x256xf32, #tpu.memory_space<vmem>>, vector<1x32x256xf32>,
    %58 = vector.extract_strided_slice %53 {offsets = [0, 256], sizes = [32, 256], strides = [1, 1]} : vector<32x512xf32> to vector<32x256xf32>
    %c3 = arith.constant 3 : index
    %c0_34 = arith.constant 0 : index
    %c0_35 = arith.constant 0 : index
    %59 = vector.load %arg6[%c3, %c0_34, %c0_35] : memref<8x32x256xf32, #tpu.memory_space<vmem>>, vector<1x32x256xf32>
    %60 = vector.shape_cast %59 : vector<1x32x256xf32> to vector<32x256xf32>
    %61 = vector.shape_cast %58 : vector<32x256xf32> to vector<1x32x256xf32>
    tpu.vector_store %arg6[%c3, %c0_34, %c0_35], %61 {strides = array<i32>} : memref<8x32x256xf32, #tpu.memory_space<vmem>>, vector<1x32x256xf32>,
    %c0_36 = arith.constant 0 : index
    %c0_37 = arith.constant 0 : index
    %c1024 = arith.constant 1024 : index
    %62 = vector.load %arg1[%c0_36, %c0_37, %c1024] : memref<1x1x2048xf32, #tpu.memory_space<vmem>>, vector<1x1x512xf32>
    %63 = vector.shape_cast %62 : vector<1x1x512xf32> to vector<1x512xf32>
    %64 = vector.broadcast %0 : f32 to vector<1x512xf32>
    %65 = arith.mulf %63, %64 : vector<1x512xf32>
    %66 = vector.broadcast %1 : f32 to vector<1x512xf32>
    %67 = arith.addf %65, %66 : vector<1x512xf32>
    %cst_38 = arith.constant 0.000000e+00 : f32
    %68 = vector.broadcast %cst_38 : f32 to vector<1x512xf32>
    %69 = arith.maximumf %67, %68 : vector<1x512xf32>
    %c17_i32_39 = arith.constant 17 : i32
    %70 = tpu.dynamic_rotate %69 by %c17_i32_39 dim 1 : vector<1x512xf32>, i32 -> vector<1x512xf32>
    %c16_i32_40 = arith.constant 16 : i32
    %71 = tpu.dynamic_rotate %69 by %c16_i32_40 dim 1 : vector<1x512xf32>, i32 -> vector<1x512xf32>
    %c15_i32_41 = arith.constant 15 : i32
    %72 = tpu.dynamic_rotate %69 by %c15_i32_41 dim 1 : vector<1x512xf32>, i32 -> vector<1x512xf32>
    %c1_i32_42 = arith.constant 1 : i32
    %73 = tpu.dynamic_rotate %69 by %c1_i32_42 dim 1 : vector<1x512xf32>, i32 -> vector<1x512xf32>
    %c511_i32_43 = arith.constant 511 : i32
    %74 = tpu.dynamic_rotate %69 by %c511_i32_43 dim 1 : vector<1x512xf32>, i32 -> vector<1x512xf32>
    %c497_i32_44 = arith.constant 497 : i32
    %75 = tpu.dynamic_rotate %69 by %c497_i32_44 dim 1 : vector<1x512xf32>, i32 -> vector<1x512xf32>
    %c496_i32_45 = arith.constant 496 : i32
    %76 = tpu.dynamic_rotate %69 by %c496_i32_45 dim 1 : vector<1x512xf32>, i32 -> vector<1x512xf32>
    %c495_i32_46 = arith.constant 495 : i32
    %77 = tpu.dynamic_rotate %69 by %c495_i32_46 dim 1 : vector<1x512xf32>, i32 -> vector<1x512xf32>
    %78 = tpu.concatenate %70, %71, %72, %73, %69, %74, %75, %76, %77 in 0 : vector<1x512xf32>, vector<1x512xf32>, vector<1x512xf32>, vector<1x512xf32>, vector<1x512xf32>, vector<1x512xf32>, vector<1x512xf32>, vector<1x512xf32>, vector<1x512xf32> -> vector<9x512xf32>
    %79 = arith.truncf %78 : vector<9x512xf32> to vector<9x512xbf16>
    %c0_47 = arith.constant 0 : index
    %c0_48 = arith.constant 0 : index
    %80 = vector.load %arg5[%c0_47, %c0_48] : memref<9x512xbf16, #tpu.memory_space<vmem>>, vector<9x512xbf16>
    %81 = arith.mulf %79, %80 : vector<9x512xbf16>
    %c0_49 = arith.constant 0 : index
    %c0_50 = arith.constant 0 : index
    %82 = vector.load %arg4[%c0_49, %c0_50] : memref<32x9xbf16, #tpu.memory_space<vmem>>, vector<32x9xbf16>
    %cst_51 = arith.constant dense<0.000000e+00> : vector<32x512xf32>
    %83 = tpu.matmul %82, %81, %cst_51 {dimension_numbers = #tpu.dot_dimension_numbers<[1], [0], [0], [1], [0, 0, 1, 1], [], []>} : vector<32x9xbf16>, vector<9x512xbf16>, vector<32x512xf32> -> vector<32x512xf32>
    %84 = vector.extract_strided_slice %83 {offsets = [0, 0], sizes = [32, 256], strides = [1, 1]} : vector<32x512xf32> to vector<32x256xf32>
    %c4 = arith.constant 4 : index
    %c0_52 = arith.constant 0 : index
    %c0_53 = arith.constant 0 : index
    %85 = vector.load %arg6[%c4, %c0_52, %c0_53] : memref<8x32x256xf32, #tpu.memory_space<vmem>>, vector<1x32x256xf32>
    %86 = vector.shape_cast %85 : vector<1x32x256xf32> to vector<32x256xf32>
    %87 = vector.shape_cast %84 : vector<32x256xf32> to vector<1x32x256xf32>
    tpu.vector_store %arg6[%c4, %c0_52, %c0_53], %87 {strides = array<i32>} : memref<8x32x256xf32, #tpu.memory_space<vmem>>, vector<1x32x256xf32>,
    %88 = vector.extract_strided_slice %83 {offsets = [0, 256], sizes = [32, 256], strides = [1, 1]} : vector<32x512xf32> to vector<32x256xf32>
    %c5 = arith.constant 5 : index
    %c0_54 = arith.constant 0 : index
    %c0_55 = arith.constant 0 : index
    %89 = vector.load %arg6[%c5, %c0_54, %c0_55] : memref<8x32x256xf32, #tpu.memory_space<vmem>>, vector<1x32x256xf32>
    %90 = vector.shape_cast %89 : vector<1x32x256xf32> to vector<32x256xf32>
    %91 = vector.shape_cast %88 : vector<32x256xf32> to vector<1x32x256xf32>
    tpu.vector_store %arg6[%c5, %c0_54, %c0_55], %91 {strides = array<i32>} : memref<8x32x256xf32, #tpu.memory_space<vmem>>, vector<1x32x256xf32>,
    %c0_56 = arith.constant 0 : index
    %c0_57 = arith.constant 0 : index
    %c1536 = arith.constant 1536 : index
    %92 = vector.load %arg1[%c0_56, %c0_57, %c1536] : memref<1x1x2048xf32, #tpu.memory_space<vmem>>, vector<1x1x512xf32>
    %93 = vector.shape_cast %92 : vector<1x1x512xf32> to vector<1x512xf32>
    %94 = vector.broadcast %0 : f32 to vector<1x512xf32>
    %95 = arith.mulf %93, %94 : vector<1x512xf32>
    %96 = vector.broadcast %1 : f32 to vector<1x512xf32>
    %97 = arith.addf %95, %96 : vector<1x512xf32>
    %cst_58 = arith.constant 0.000000e+00 : f32
    %98 = vector.broadcast %cst_58 : f32 to vector<1x512xf32>
    %99 = arith.maximumf %97, %98 : vector<1x512xf32>
    %c17_i32_59 = arith.constant 17 : i32
    %100 = tpu.dynamic_rotate %99 by %c17_i32_59 dim 1 : vector<1x512xf32>, i32 -> vector<1x512xf32>
    %c16_i32_60 = arith.constant 16 : i32
    %101 = tpu.dynamic_rotate %99 by %c16_i32_60 dim 1 : vector<1x512xf32>, i32 -> vector<1x512xf32>
    %c15_i32_61 = arith.constant 15 : i32
    %102 = tpu.dynamic_rotate %99 by %c15_i32_61 dim 1 : vector<1x512xf32>, i32 -> vector<1x512xf32>
    %c1_i32_62 = arith.constant 1 : i32
    %103 = tpu.dynamic_rotate %99 by %c1_i32_62 dim 1 : vector<1x512xf32>, i32 -> vector<1x512xf32>
    %c511_i32_63 = arith.constant 511 : i32
    %104 = tpu.dynamic_rotate %99 by %c511_i32_63 dim 1 : vector<1x512xf32>, i32 -> vector<1x512xf32>
    %c497_i32_64 = arith.constant 497 : i32
    %105 = tpu.dynamic_rotate %99 by %c497_i32_64 dim 1 : vector<1x512xf32>, i32 -> vector<1x512xf32>
    %c496_i32_65 = arith.constant 496 : i32
    %106 = tpu.dynamic_rotate %99 by %c496_i32_65 dim 1 : vector<1x512xf32>, i32 -> vector<1x512xf32>
    %c495_i32_66 = arith.constant 495 : i32
    %107 = tpu.dynamic_rotate %99 by %c495_i32_66 dim 1 : vector<1x512xf32>, i32 -> vector<1x512xf32>
    %108 = tpu.concatenate %100, %101, %102, %103, %99, %104, %105, %106, %107 in 0 : vector<1x512xf32>, vector<1x512xf32>, vector<1x512xf32>, vector<1x512xf32>, vector<1x512xf32>, vector<1x512xf32>, vector<1x512xf32>, vector<1x512xf32>, vector<1x512xf32> -> vector<9x512xf32>
    %109 = arith.truncf %108 : vector<9x512xf32> to vector<9x512xbf16>
    %c0_67 = arith.constant 0 : index
    %c0_68 = arith.constant 0 : index
    %110 = vector.load %arg5[%c0_67, %c0_68] : memref<9x512xbf16, #tpu.memory_space<vmem>>, vector<9x512xbf16>
    %111 = arith.mulf %109, %110 : vector<9x512xbf16>
    %c0_69 = arith.constant 0 : index
    %c0_70 = arith.constant 0 : index
    %112 = vector.load %arg4[%c0_69, %c0_70] : memref<32x9xbf16, #tpu.memory_space<vmem>>, vector<32x9xbf16>
    %cst_71 = arith.constant dense<0.000000e+00> : vector<32x512xf32>
    %113 = tpu.matmul %112, %111, %cst_71 {dimension_numbers = #tpu.dot_dimension_numbers<[1], [0], [0], [1], [0, 0, 1, 1], [], []>} : vector<32x9xbf16>, vector<9x512xbf16>, vector<32x512xf32> -> vector<32x512xf32>
    %114 = vector.extract_strided_slice %113 {offsets = [0, 0], sizes = [32, 256], strides = [1, 1]} : vector<32x512xf32> to vector<32x256xf32>
    %c6 = arith.constant 6 : index
    %c0_72 = arith.constant 0 : index
    %c0_73 = arith.constant 0 : index
    %115 = vector.load %arg6[%c6, %c0_72, %c0_73] : memref<8x32x256xf32, #tpu.memory_space<vmem>>, vector<1x32x256xf32>
    %116 = vector.shape_cast %115 : vector<1x32x256xf32> to vector<32x256xf32>
    %117 = vector.shape_cast %114 : vector<32x256xf32> to vector<1x32x256xf32>
    tpu.vector_store %arg6[%c6, %c0_72, %c0_73], %117 {strides = array<i32>} : memref<8x32x256xf32, #tpu.memory_space<vmem>>, vector<1x32x256xf32>,
    %118 = vector.extract_strided_slice %113 {offsets = [0, 256], sizes = [32, 256], strides = [1, 1]} : vector<32x512xf32> to vector<32x256xf32>
    %c7 = arith.constant 7 : index
    %c0_74 = arith.constant 0 : index
    %c0_75 = arith.constant 0 : index
    %119 = vector.load %arg6[%c7, %c0_74, %c0_75] : memref<8x32x256xf32, #tpu.memory_space<vmem>>, vector<1x32x256xf32>
    %120 = vector.shape_cast %119 : vector<1x32x256xf32> to vector<32x256xf32>
    %121 = vector.shape_cast %118 : vector<32x256xf32> to vector<1x32x256xf32>
    tpu.vector_store %arg6[%c7, %c0_74, %c0_75], %121 {strides = array<i32>} : memref<8x32x256xf32, #tpu.memory_space<vmem>>, vector<1x32x256xf32>,
    return
  }
  func.func @transform_0(%arg0: i32) -> (i32, i32, i32) {
    %c0_i32 = arith.constant 0 : i32
    %c0_i32_0 = arith.constant 0 : i32
    %c0_i32_1 = arith.constant 0 : i32
    return %arg0, %c0_i32, %c0_i32_0 : i32, i32, i32
  }
  func.func @transform_1(%arg0: i32) -> (i32, i32) {
    %c0_i32 = arith.constant 0 : i32
    %c0_i32_0 = arith.constant 0 : i32
    %c0_i32_1 = arith.constant 0 : i32
    return %c0_i32, %c0_i32_0 : i32, i32
  }
  func.func @transform_2(%arg0: i32) -> (i32, i32) {
    %c0_i32 = arith.constant 0 : i32
    %c0_i32_0 = arith.constant 0 : i32
    %c0_i32_1 = arith.constant 0 : i32
    return %c0_i32, %c0_i32_0 : i32, i32
  }
  func.func @transform_3(%arg0: i32) -> (i32, i32) {
    %c0_i32 = arith.constant 0 : i32
    %c0_i32_0 = arith.constant 0 : i32
    %c0_i32_1 = arith.constant 0 : i32
    return %c0_i32, %c0_i32_0 : i32, i32
  }
  func.func @transform_4(%arg0: i32) -> (i32, i32) {
    %c0_i32 = arith.constant 0 : i32
    %c0_i32_0 = arith.constant 0 : i32
    %c0_i32_1 = arith.constant 0 : i32
    return %c0_i32, %c0_i32_0 : i32, i32
  }
  func.func @transform_5(%arg0: i32) -> (i32, i32, i32) {
    %c0_i32 = arith.constant 0 : i32
    %c0_i32_0 = arith.constant 0 : i32
    %c0_i32_1 = arith.constant 0 : i32
    return %arg0, %c0_i32, %c0_i32_0 : i32, i32, i32
  }
}

</mosaic_0001>

<llo_original>
// kernel: dense_inception_stem_forward.1
$region0: #{dense_inception_stem_forward.1}
  #allocation0 [shape = 'u32[]', space=smem, size = 0x4, offset = 0x4, fixed_abs, tag = 'smem constant byte address 0x4 - core index']
  #allocation1 [shape = 'u32[144,128]{1,0:T(1,128)}', space=vmem, size = 0x12000, scoped, tag = 'internal scratch']
  #allocation2 [shape = 'f32[1,1]{1,0:T(1,128)S(6)}', space=smem, size = 0x200, scoped, tag = 'scoped memory for dense_inception_stem_forward.1']
  #allocation3 [shape = 'f32[1,1]{1,0:T(1,128)S(6)}', space=smem, size = 0x200, scoped, tag = 'scoped memory for dense_inception_stem_forward.1']
  %s0 = inlined_call_operand.vmem [shape: f32[2,1,2048], index: 0, kind: input, shape index: {}]
  %s1 = inlined_call_operand.<no memory space> [shape: f32[1,1], index: 1, kind: input, shape index: {}]
  %s2 = inlined_call_operand.<no memory space> [shape: f32[1,1], index: 2, kind: input, shape index: {}]
  %s3 = inlined_call_operand.vmem [shape: bf16[32,9], index: 3, kind: input, shape index: {}]
  %s4 = inlined_call_operand.hbm [shape: bf16[9,512], index: 4, kind: input, shape index: {}]
  %s5 = inlined_call_operand.vmem [shape: f32[16,32,256], index: 5, kind: output, shape index: {}]
  %s6 = sld [smem:[#allocation0]]
  $region57: #{dense_inception_stem_forward.1} parent=0
    _
  %s8 = ssub.s32 1, %s6
  %s9 = scalar_select 0, %s8, %s6
  %10 = sst [smem:[#allocation2]] %s1
  %11 = sst [smem:[#allocation3]] %s2
  $region1: #{dense_inception_stem_forward.1} parent=0
    #allocation4 [shape = 'u8[16384]{0}', space=vmem, size = 0x4000, scoped, tag = 'input window, operand 4, single buffered']
    #allocation5 [shape = 's32[2]{0}', space=sflag, size = 0x8, scoped, tag = 'scoped memory for dense_inception_stem_forward.1']
    %12 = vsyncpa [#allocation5], 0
    loop: start=0, step=1, limit=4
    $region2: #{dense_inception_stem_forward.1} parent=1 // loop_pre_header
      _
    $region3: #{dense_inception_stem_forward.1} parent=1 // loop_header
      %s14 = sphi 0, %s18
      %p15 = scmp.ge.s32.totalorder %s14, 4
      %s24 = sphi 0, %s26
      %s27 = sphi 0, %s24
      %s28 = sphi 0, %s27
      %s44 = sphi 0, %s28
      %s48 = sphi 0, %s48
      %s50 = sphi 0, %s48
      %s51 = sphi 0, %s50
      %s65 = sphi 0, %s51
      %s69 = sphi 0, %s69
      %s71 = sphi 0, %s69
      %s72 = sphi 0, %s71
      %s86 = sphi 0, %s72
      %s90 = sphi 0, %s90
      %s92 = sphi 0, %s90
      %s93 = sphi 0, %s92
      %s107 = sphi 0, %s93
      %s111 = sphi 0, %s111
      %s113 = sphi 0, %s111
      %s114 = sphi 0, %s113
      %s128 = sphi 0, %s114
      %s134 = sphi 0, %s136
      %s137 = sphi 0, %s134
      %s138 = sphi 0, %s137
      %s154 = sphi 0, %s138
    $region4: #{dense_inception_stem_forward.1} parent=1 // loop_header_branch
      %17 = sbr.rel (%p15) target = $region8
    $region5: #{dense_inception_stem_forward.1} parent=1 // loop_body
      %s19 = ssub.s32 %s14, 1
      %s20 = ssub.s32 %s14, 2
      %s21 = sadd.s32 %s14, 1
      %s22 = ssub.s32 %s14, %s21
      %p23 = scmp.eq.s32.totalorder %s22, 0
      %s25 = sadd.s32 %s24, 1
      %s26 = scalar_select %p23, %s24, %s25
      %p29 = pneg %p23
      %p30 = scmp.eq.s32.totalorder %s14, 1
      %p31 = por %p29, %p30
      %p32 = scmp.ne.s32.totalorder %s24, %s27
      %p33 = scmp.eq.s32.totalorder %s14, 0
      %p34 = por %p32, %p33
      %p35 = scmp.ne.s32.totalorder %s24, %s27
      %p36 = scmp.eq.s32.totalorder %s19, 1
      %p37 = por %p35, %p36
      %p38 = scmp.ne.s32.totalorder %s27, %s28
      %p39 = scmp.eq.s32.totalorder %s19, 0
      %p40 = por %p38, %p39
      %p41 = scmp.ne.s32.totalorder %s27, %s28
      %p42 = scmp.eq.s32.totalorder %s20, 1
      %p43 = por %p41, %p42
      %p45 = scmp.ne.s32.totalorder %s28, %s44
      %p46 = scmp.eq.s32.totalorder %s20, 0
      %p47 = por %p45, %p46
      %s49 = sadd.s32 %s48, 1
      %p52 = scmp.eq.s32.totalorder %s14, 1
      %p53 = scmp.ne.s32.totalorder %s48, %s50
      %p54 = scmp.eq.s32.totalorder %s14, 0
      %p55 = por %p53, %p54
      %p56 = scmp.ne.s32.totalorder %s48, %s50
      %p57 = scmp.eq.s32.totalorder %s19, 1
      %p58 = por %p56, %p57
      %p59 = scmp.ne.s32.totalorder %s50, %s51
      %p60 = scmp.eq.s32.totalorder %s19, 0
      %p61 = por %p59, %p60
      %p62 = scmp.ne.s32.totalorder %s50, %s51
      %p63 = scmp.eq.s32.totalorder %s20, 1
      %p64 = por %p62, %p63
      %p66 = scmp.ne.s32.totalorder %s51, %s65
      %p67 = scmp.eq.s32.totalorder %s20, 0
      %p68 = por %p66, %p67
      %s70 = sadd.s32 %s69, 1
      %p73 = scmp.eq.s32.totalorder %s14, 1
      %p74 = scmp.ne.s32.totalorder %s69, %s71
      %p75 = scmp.eq.s32.totalorder %s14, 0
      %p76 = por %p74, %p75
      %p77 = scmp.ne.s32.totalorder %s69, %s71
      %p78 = scmp.eq.s32.totalorder %s19, 1
      %p79 = por %p77, %p78
      %p80 = scmp.ne.s32.totalorder %s71, %s72
      %p81 = scmp.eq.s32.totalorder %s19, 0
      %p82 = por %p80, %p81
      %p83 = scmp.ne.s32.totalorder %s71, %s72
      %p84 = scmp.eq.s32.totalorder %s20, 1
      %p85 = por %p83, %p84
      %p87 = scmp.ne.s32.totalorder %s72, %s86
      %p88 = scmp.eq.s32.totalorder %s20, 0
      %p89 = por %p87, %p88
      %s91 = sadd.s32 %s90, 1
      %p94 = scmp.eq.s32.totalorder %s14, 1
      %p95 = scmp.ne.s32.totalorder %s90, %s92
      %p96 = scmp.eq.s32.totalorder %s14, 0
      %p97 = por %p95, %p96
      %p98 = scmp.ne.s32.totalorder %s90, %s92
      %p99 = scmp.eq.s32.totalorder %s19, 1
      %p100 = por %p98, %p99
      %p101 = scmp.ne.s32.totalorder %s92, %s93
      %p102 = scmp.eq.s32.totalorder %s19, 0
      %p103 = por %p101, %p102
      %p104 = scmp.ne.s32.totalorder %s92, %s93
      %p105 = scmp.eq.s32.totalorder %s20, 1
      %p106 = por %p104, %p105
      %p108 = scmp.ne.s32.totalorder %s93, %s107
      %p109 = scmp.eq.s32.totalorder %s20, 0
      %p110 = por %p108, %p109
      %s112 = sadd.s32 %s111, 1
      %p115 = scmp.eq.s32.totalorder %s14, 1
      %p116 = scmp.ne.s32.totalorder %s111, %s113
      %p117 = scmp.eq.s32.totalorder %s14, 0
      %p118 = por %p116, %p117
      %p119 = scmp.ne.s32.totalorder %s111, %s113
      %p120 = scmp.eq.s32.totalorder %s19, 1
      %p121 = por %p119, %p120
      %p122 = scmp.ne.s32.totalorder %s113, %s114
      %p123 = scmp.eq.s32.totalorder %s19, 0
      %p124 = por %p122, %p123
      %p125 = scmp.ne.s32.totalorder %s113, %s114
      %p126 = scmp.eq.s32.totalorder %s20, 1
      %p127 = por %p125, %p126
      %p129 = scmp.ne.s32.totalorder %s114, %s128
      %p130 = scmp.eq.s32.totalorder %s20, 0
      %p131 = por %p129, %p130
      %s132 = ssub.s32 %s14, %s21
      %p133 = scmp.eq.s32.totalorder %s132, 0
      %s135 = sadd.s32 %s134, 1
      %s136 = scalar_select %p133, %s134, %s135
      %p139 = pneg %p133
      %p140 = scmp.eq.s32.totalorder %s14, 1
      %p141 = por %p139, %p140
      %p142 = scmp.ne.s32.totalorder %s134, %s137
      %p143 = scmp.eq.s32.totalorder %s14, 0
      %p144 = por %p142, %p143
      %p145 = scmp.ne.s32.totalorder %s134, %s137
      %p146 = scmp.eq.s32.totalorder %s19, 1
      %p147 = por %p145, %p146
      %p148 = scmp.ne.s32.totalorder %s137, %s138
      %p149 = scmp.eq.s32.totalorder %s19, 0
      %p150 = por %p148, %p149
      %p151 = scmp.ne.s32.totalorder %s137, %s138
      %p152 = scmp.eq.s32.totalorder %s20, 1
      %p153 = por %p151, %p152
      %p155 = scmp.ne.s32.totalorder %s138, %s154
      %p156 = scmp.eq.s32.totalorder %s20, 0
      %p157 = por %p155, %p156
      %p158 = scmp.le.s32.totalorder 1, %s14
      %p159 = scmp.lt.s32.totalorder %s14, 3
      %p160 = pnand %p158, %p159
      %p161 = pneg %p160
      // Predicated region
      $region9: #{dense_inception_stem_forward.1} parent=5 // pred_check
        _
      $region10: #{dense_inception_stem_forward.1} parent=5 // pred_check_branch
        %163 = sbr.rel (%p160) target = $region12
      $region11: #{dense_inception_stem_forward.1} parent=5 // pred_region
        %s164 = ssub.s32 %s14, 1
        // Predicated region
        $region13: #{dense_inception_stem_forward.1} parent=11 // pred_check
          %p165 = pneg %p61
        $region14: #{dense_inception_stem_forward.1} parent=11 // pred_check_branch
          %167 = sbr.rel (%p165) target = $region16
        $region15: #{dense_inception_stem_forward.1} parent=11 // pred_region
          _
        $region16: #{dense_inception_stem_forward.1} parent=11 // pred_fallthru
          _
        // Predicated region
        $region17: #{dense_inception_stem_forward.1} parent=11 // pred_check
          %p168 = pneg %p82
        $region18: #{dense_inception_stem_forward.1} parent=11 // pred_check_branch
          %170 = sbr.rel (%p168) target = $region20
        $region19: #{dense_inception_stem_forward.1} parent=11 // pred_region
          _
        $region20: #{dense_inception_stem_forward.1} parent=11 // pred_fallthru
          _
        // Predicated region
        $region21: #{dense_inception_stem_forward.1} parent=11 // pred_check
          %p171 = pneg %p103
        $region22: #{dense_inception_stem_forward.1} parent=11 // pred_check_branch
          %173 = sbr.rel (%p171) target = $region24
        $region23: #{dense_inception_stem_forward.1} parent=11 // pred_region
          _
        $region24: #{dense_inception_stem_forward.1} parent=11 // pred_fallthru
          _
        // Predicated region
        $region25: #{dense_inception_stem_forward.1} parent=11 // pred_check
          %p174 = pneg %p124
        $region26: #{dense_inception_stem_forward.1} parent=11 // pred_check_branch
          %176 = sbr.rel (%p174) target = $region28
        $region27: #{dense_inception_stem_forward.1} parent=11 // pred_region
          %s178 = ssub.s32 512, 512
          %179 = vsyncadd [#allocation5], %s178
          %s180 = sshll.u32 [#allocation4], 4
          %s181 = int_to_ptr.vmem [resolvable:$true] %s180
          %186 = dma.hbm_to_vmem [thread:$0]  %s4, 512, %s181, [#allocation5], 256, 256, 16
        $region28: #{dense_inception_stem_forward.1} parent=11 // pred_fallthru
          _
      $region12: #{dense_inception_stem_forward.1} parent=5 // pred_fallthru
        _
      %p187 = scmp.lt.s32.totalorder %s14, 2
      // Predicated region
      $region29: #{dense_inception_stem_forward.1} parent=5 // pred_check
        %p188 = pneg %p187
      $region30: #{dense_inception_stem_forward.1} parent=5 // pred_check_branch
        %190 = sbr.rel (%p188) target = $region32
      $region31: #{dense_inception_stem_forward.1} parent=5 // pred_region
        // Predicated region
        $region33: #{dense_inception_stem_forward.1} parent=31 // pred_check
          %p191 = pneg %p34
        $region34: #{dense_inception_stem_forward.1} parent=31 // pred_check_branch
          %193 = sbr.rel (%p191) target = $region36
        $region35: #{dense_inception_stem_forward.1} parent=31 // pred_region
          %p194 = scmp.lt.s32.totalorder %s14, 1
          %s195 = scalar_select %p194, %s14, 1
          %s196 = smul.addr %s195, 16
          %s197 = scalar_lea.vmem %s0, %s196
        $region36: #{dense_inception_stem_forward.1} parent=31 // pred_fallthru
          _
      $region32: #{dense_inception_stem_forward.1} parent=5 // pred_fallthru
        _
      %p198 = scmp.le.s32.totalorder 1, %s14
      %p199 = scmp.lt.s32.totalorder %s14, 3
      %p200 = pnand %p198, %p199
      %p201 = pneg %p200
      // Predicated region
      $region37: #{dense_inception_stem_forward.1} parent=5 // pred_check
        _
      $region38: #{dense_inception_stem_forward.1} parent=5 // pred_check_branch
        %203 = sbr.rel (%p200) target = $region40
      $region39: #{dense_inception_stem_forward.1} parent=5 // pred_region
        %s204 = ssub.s32 %s14, 1
        // Predicated region
        $region41: #{dense_inception_stem_forward.1} parent=39 // pred_check
          %p205 = pneg %p124
        $region42: #{dense_inception_stem_forward.1} parent=39 // pred_check_branch
          %207 = sbr.rel (%p205) target = $region44
        $region43: #{dense_inception_stem_forward.1} parent=39 // pred_region
          %208 = dma.done [#allocation5], 512
        $region44: #{dense_inception_stem_forward.1} parent=39 // pred_fallthru
          _
        %p209 = scmp.lt.s32.totalorder %s19, 1
        %s210 = scalar_select %p209, %s19, 1
        %s211 = smul.addr %s210, 16
        %s212 = scalar_lea.vmem %s0, %s211
        %p213 = pneg %p40
        %p214 = pneg %p37
        %p215 = pneg %p61
        %p216 = pneg %p58
        %p217 = pneg %p82
        %p218 = pneg %p79
        %p219 = pneg %p103
        %p220 = pneg %p100
        %p221 = pneg %p124
        %p222 = pneg %p121
        %p223 = pneg %p150
        %p224 = pneg %p147
        %s225 = smul.u32 8, %s19
        %p226 = scmp.lt.s32.totalorder %s225, 15
        %s227 = scalar_select %p226, %s225, 15
        %s228 = smul.addr %s227, 8
        %s229 = smul.addr %s228, 8
        %s230 = scalar_lea.vmem %s5, %s229
        %p231 = scmp.lt.s32.totalorder %s19, 1
        %s232 = scalar_select %p231, %s19, 1
        %s233 = smul.addr %s232, 16
        %s234 = scalar_lea.vmem %s0, %s233
        %s235 = smul.u32 8, %s19
        %p236 = scmp.lt.s32.totalorder %s235, 15
        %s237 = scalar_select %p236, %s235, 15
        %s238 = smul.addr %s237, 8
        %s239 = smul.addr %s238, 8
        %s240 = scalar_lea.vmem %s5, %s239
        %s241 = smul.u32 8, %s19
        %s243 = sld [smem:[#allocation2]]
        %s244 = sld [smem:[#allocation3]]
        %v245 = vld [vmem:[%s234] sm:$0xf]
        %v246 = vstv %s243
        %v247 = vmul.f32 %v245, %v246
        %v248 = vstv %s244
        %v249 = vadd.f32 %v247, %v248
        %v250 = vmax.f32 %v249, 0.0
        %v252 = vlaneseq
        %v253 = vshrl.u32 %v252, 7
        %v254 = vsub.s32 0, %v253
        %v255 = vrot.slane %v250, %v254
        %v256 = vlaneseq
        %v257 = vshrl.u32 %v256, 7
        %v258 = vsub.s32 1, %v257
        %v259 = vrot.slane %v250, %v258
        %v260 = vlaneseq
        %v261 = vshrl.u32 %v260, 7
        %v262 = vsub.s32 2, %v261
        %v263 = vrot.slane %v250, %v262
        %v264 = vlaneseq
        %v265 = vshrl.u32 %v264, 7
        %v266 = vsub.s32 3, %v265
        %v267 = vrot.slane %v250, %v266
        %272 = vrot.lane.b32.xlu0 %v255, 17
        %v273 = vpop.permute.xlu0 %272
        %274 = vrot.lane.b32.xlu0 %v259, 17
        %v275 = vpop.permute.xlu0 %274
        %276 = vrot.lane.b32.xlu0 %v263, 17
        %v277 = vpop.permute.xlu0 %276
        %278 = vrot.lane.b32.xlu0 %v267, 17
        %v279 = vpop.permute.xlu0 %278
        %v280 = vlaneseq
        %v281 = vand.u32 %v280, 127
        %vm282 = vcmp.lt.s32.totalorder %v281, 17
        %v283 = vsel %vm282, %v277, %v279
        %v284 = vsel %vm282, %v275, %v277
        %v285 = vsel %vm282, %v273, %v275
        %v286 = vsel %vm282, %v279, %v273
        %287 = vrot.lane.b32.xlu0 %v255, 16
        %v288 = vpop.permute.xlu0 %287
        %289 = vrot.lane.b32.xlu0 %v259, 16
        %v290 = vpop.permute.xlu0 %289
        %291 = vrot.lane.b32.xlu0 %v263, 16
        %v292 = vpop.permute.xlu0 %291
        %293 = vrot.lane.b32.xlu0 %v267, 16
        %v294 = vpop.permute.xlu0 %293
        %vm295 = vcmp.lt.s32.totalorder %v281, 16
        %v296 = vsel %vm295, %v292, %v294
        %v297 = vsel %vm295, %v290, %v292
        %v298 = vsel %vm295, %v288, %v290
        %v299 = vsel %vm295, %v294, %v288
        %300 = vrot.lane.b32.xlu0 %v255, 15
        %v301 = vpop.permute.xlu0 %300
        %302 = vrot.lane.b32.xlu0 %v259, 15
        %v303 = vpop.permute.xlu0 %302
        %304 = vrot.lane.b32.xlu0 %v263, 15
        %v305 = vpop.permute.xlu0 %304
        %306 = vrot.lane.b32.xlu0 %v267, 15
        %v307 = vpop.permute.xlu0 %306
        %vm308 = vcmp.lt.s32.totalorder %v281, 15
        %v309 = vsel %vm308, %v305, %v307
        %v310 = vsel %vm308, %v303, %v305
        %v311 = vsel %vm308, %v301, %v303
        %v312 = vsel %vm308, %v307, %v301
        %313 = vrot.lane.b32.xlu0 %v255, 1
        %v314 = vpop.permute.xlu0 %313
        %315 = vrot.lane.b32.xlu0 %v259, 1
        %v316 = vpop.permute.xlu0 %315
        %317 = vrot.lane.b32.xlu0 %v263, 1
        %v318 = vpop.permute.xlu0 %317
        %319 = vrot.lane.b32.xlu0 %v267, 1
        %v320 = vpop.permute.xlu0 %319
        %vm321 = vcmp.lt.s32.totalorder %v281, 1
        %v322 = vsel %vm321, %v318, %v320
        %v323 = vsel %vm321, %v316, %v318
        %v324 = vsel %vm321, %v314, %v316
        %v325 = vsel %vm321, %v320, %v314
        %326 = vrot.lane.b32.xlu0 %v255, 127
        %v327 = vpop.permute.xlu0 %326
        %328 = vrot.lane.b32.xlu0 %v259, 127
        %v329 = vpop.permute.xlu0 %328
        %330 = vrot.lane.b32.xlu0 %v263, 127
        %v331 = vpop.permute.xlu0 %330
        %332 = vrot.lane.b32.xlu0 %v267, 127
        %v333 = vpop.permute.xlu0 %332
        %vm334 = vcmp.lt.s32.totalorder %v281, 127
        %v335 = vsel %vm334, %v331, %v333
        %v336 = vsel %vm334, %v329, %v331
        %v337 = vsel %vm334, %v327, %v329
        %v338 = vsel %vm334, %v333, %v327
        %339 = vrot.lane.b32.xlu0 %v255, 113
        %v340 = vpop.permute.xlu0 %339
        %341 = vrot.lane.b32.xlu0 %v259, 113
        %v342 = vpop.permute.xlu0 %341
        %343 = vrot.lane.b32.xlu0 %v263, 113
        %v344 = vpop.permute.xlu0 %343
        %345 = vrot.lane.b32.xlu0 %v267, 113
        %v346 = vpop.permute.xlu0 %345
        %vm347 = vcmp.lt.s32.totalorder %v281, 113
        %v348 = vsel %vm347, %v344, %v346
        %v349 = vsel %vm347, %v342, %v344
        %v350 = vsel %vm347, %v340, %v342
        %v351 = vsel %vm347, %v346, %v340
        %352 = vrot.lane.b32.xlu0 %v255, 112
        %v353 = vpop.permute.xlu0 %352
        %354 = vrot.lane.b32.xlu0 %v259, 112
        %v355 = vpop.permute.xlu0 %354
        %356 = vrot.lane.b32.xlu0 %v263, 112
        %v357 = vpop.permute.xlu0 %356
        %358 = vrot.lane.b32.xlu0 %v267, 112
        %v359 = vpop.permute.xlu0 %358
        %vm360 = vcmp.lt.s32.totalorder %v281, 112
        %v361 = vsel %vm360, %v357, %v359
        %v362 = vsel %vm360, %v355, %v357
        %v363 = vsel %vm360, %v353, %v355
        %v364 = vsel %vm360, %v359, %v353
        %365 = vrot.lane.b32.xlu0 %v255, 111
        %v366 = vpop.permute.xlu0 %365
        %367 = vrot.lane.b32.xlu0 %v259, 111
        %v368 = vpop.permute.xlu0 %367
        %369 = vrot.lane.b32.xlu0 %v263, 111
        %v370 = vpop.permute.xlu0 %369
        %371 = vrot.lane.b32.xlu0 %v267, 111
        %v372 = vpop.permute.xlu0 %371
        %vm373 = vcmp.lt.s32.totalorder %v281, 111
        %v374 = vsel %vm373, %v370, %v372
        %v375 = vsel %vm373, %v368, %v370
        %v376 = vsel %vm373, %v366, %v368
        %v377 = vsel %vm373, %v372, %v366
        %v382 = vrot.slane %v299, 7
        %v383 = vrot.slane %v298, 7
        %v384 = vrot.slane %v297, 7
        %v385 = vrot.slane %v296, 7
        %v394 = vrot.slane %v312, 6
        %v395 = vrot.slane %v311, 6
        %v396 = vrot.slane %v310, 6
        %v397 = vrot.slane %v309, 6
        %v406 = vrot.slane %v325, 5
        %v407 = vrot.slane %v324, 5
        %v408 = vrot.slane %v323, 5
        %v409 = vrot.slane %v322, 5
        %v418 = vrot.slane %v337, 3
        %v419 = vrot.slane %v336, 3
        %v420 = vrot.slane %v335, 3
        %v421 = vrot.slane %v338, 3
        %v430 = vrot.slane %v350, 2
        %v431 = vrot.slane %v349, 2
        %v432 = vrot.slane %v348, 2
        %v433 = vrot.slane %v351, 2
        %v442 = vrot.slane %v363, 1
        %v443 = vrot.slane %v362, 1
        %v444 = vrot.slane %v361, 1
        %v445 = vrot.slane %v364, 1
        %vm450 = vcmask 1040384
        %v451 = vsel %vm450, %v286, %v382
        %v452 = vsel %vm450, %v285, %v383
        %v453 = vsel %vm450, %v284, %v384
        %v454 = vsel %vm450, %v283, %v385
        %vm455 = vcmask 1041408
        %v456 = vsel %vm455, %v451, %v394
        %v457 = vsel %vm455, %v452, %v395
        %v458 = vsel %vm455, %v453, %v396
        %v459 = vsel %vm455, %v454, %v397
        %vm460 = vcmask 1042432
        %v461 = vsel %vm460, %v456, %v406
        %v462 = vsel %vm460, %v457, %v407
        %v463 = vsel %vm460, %v458, %v408
        %v464 = vsel %vm460, %v459, %v409
        %vm465 = vcmask 1043456
        %v466 = vsel %vm465, %v461, %v255
        %v467 = vsel %vm465, %v462, %v259
        %v468 = vsel %vm465, %v463, %v263
        %v469 = vsel %vm465, %v464, %v267
        %vm470 = vcmask 1044480
        %v471 = vsel %vm470, %v466, %v418
        %v472 = vsel %vm470, %v467, %v419
        %v473 = vsel %vm470, %v468, %v420
        %v474 = vsel %vm470, %v469, %v421
        %vm475 = vcmask 1045504
        %v476 = vsel %vm475, %v471, %v430
        %v477 = vsel %vm475, %v472, %v431
        %v478 = vsel %vm475, %v473, %v432
        %v479 = vsel %vm475, %v474, %v433
        %vm480 = vcmask 1046528
        %v481 = vsel %vm480, %v476, %v442
        %v482 = vsel %vm480, %v477, %v443
        %v483 = vsel %vm480, %v478, %v444
        %v484 = vsel %vm480, %v479, %v445
        %v485 = vpack.c.bf16 %v376, %v481
        %v486 = vpack.c.bf16 %v375, %v482
        %v487 = vpack.c.bf16 %v374, %v483
        %v488 = vpack.c.bf16 %v377, %v484
        %v489 = vld [vmem:[#allocation4] sm:$0xff]
        %v490 = vld [vmem:[#allocation4 + $0x8] sm:$0xff]
        %v491 = vld [vmem:[#allocation4 + $0x10] sm:$0x11]
        %v492 = vld [vmem:[#allocation4 + $0x18] sm:$0x11]
        %v497 = vunpack.c.l.b16 %v489
        %v498 = vunpack.c.h.b16 %v489
        %v499 = vunpack.c.l.b16 %v490
        %v500 = vunpack.c.h.b16 %v490
        %v501 = vunpack.c.l.b16 %v491
        %v502 = vunpack.c.h.b16 %v491
        %v503 = vunpack.c.l.b16 %v492
        %v504 = vunpack.c.h.b16 %v492
        %v505 = vpack.c.b16 %v501, %v497
        %v506 = vpack.c.b16 %v502, %v498
        %v507 = vpack.c.b16 %v503, %v499
        %v508 = vpack.c.b16 %v504, %v500
        %v513 = vmul.bf16 %v485, %v505
        %v514 = vmul.bf16 %v486, %v506
        %v515 = vmul.bf16 %v487, %v507
        %v516 = vmul.bf16 %v488, %v508
        %v517 = vld [vmem:[%s3] sm:$0xf]
        %v518 = vld [vmem:[%s3 + $0x4] sm:$0xf]
        %v519 = vld [vmem:[%s3 + $0x8] sm:$0xf]
        %v520 = vld [vmem:[%s3 + $0xc] sm:$0xf]
        %v525 = vunpack.c.l.b16 %v517
        %v526 = vunpack.c.l.b16 %v518
        %v527 = vunpack.c.l.b16 %v519
        %v528 = vunpack.c.l.b16 %v520
        %v529 = vpack.c.b16 %v526, %v525
        %v530 = vpack.c.b16 %v528, %v527
        %vm531 = vcmask 72704
        %v533 = vsel %vm531, %v529, 0
        %v536 = vsel %vm531, %v530, 0
        %v538 = vsel %vm465, 4294967295, 65535
        %v539 = vsel %vm470, %v538, 0
        %v541 = vand.u32 %v513, %v539
        %v544 = vand.u32 %v514, %v539
        %v547 = vand.u32 %v515, %v539
        %v550 = vand.u32 %v516, %v539
        %552 = vmatprep.subr.bf16.mxu0 %v544
        %553 = vmatpush1.bf16.msra.mxu0 %v541
        %554 = vmatprep.subr.bf16.mxu0 0
        %555 = vmatpush1.bf16.msra.mxu0 0
        %556 = vmatprep.subr.bf16.mxu0 0
        %557 = vmatpush1.bf16.msra.mxu0 0
        %558 = vmatprep.subr.bf16.mxu0 0
        %559 = vmatpush1.bf16.msra.mxu0 0
        %560 = vmatprep.subr.bf16.mxu0 0
        %561 = vmatpush1.bf16.msra.mxu0 0
        %562 = vmatprep.subr.bf16.mxu0 0
        %563 = vmatpush1.bf16.msra.mxu0 0
        %564 = vmatprep.subr.bf16.mxu0 0
        %565 = vmatpush1.bf16.msra.mxu0 0
        %566 = vmatprep.subr.bf16.mxu0 0
        %567 = vmatpush1.bf16.msra.mxu0 0
        %568 = vmatprep.subr.bf16.mxu0 0
        %569 = vmatpush1.bf16.msra.mxu0 0
        %570 = vmatprep.subr.bf16.mxu0 0
        %571 = vmatpush1.bf16.msra.mxu0 0
        %572 = vmatprep.subr.bf16.mxu0 0
        %573 = vmatpush1.bf16.msra.mxu0 0
        %574 = vmatprep.subr.bf16.mxu0 0
        %575 = vmatpush1.bf16.msra.mxu0 0
        %576 = vmatprep.subr.bf16.mxu0 0
        %577 = vmatpush1.bf16.msra.mxu0 0
        %578 = vmatprep.subr.bf16.mxu0 0
        %579 = vmatpush1.bf16.msra.mxu0 0
        %580 = vmatprep.subr.bf16.mxu0 0
        %581 = vmatpush1.bf16.msra.mxu0 0
        %582 = vmatprep.subr.bf16.mxu0 0
        %583 = vmatpush1.bf16.msra.mxu0 0
        %584 = vmatprep.mubr.bf16.mxu0 0
        %585 = vmatmul.mubr.bf16.gmra.mrb[0].mxu0 %v533
        %v586 = vpop.f32.mrb[0].mxu0
        %v587 = vadd.f32 0.0, %v586
        %v588 = vpop.f32.mrb[0].mxu0
        %v589 = vadd.f32 0.0, %v588
        %v590 = vpop.f32.mrb[0].mxu0
        %v591 = vadd.f32 0.0, %v590
        %v592 = vpop.f32.mrb[0].mxu0
        %v593 = vadd.f32 0.0, %v592
        %594 = vmatprep.mubr.bf16.mxu0 0
        %595 = vmatmul.mubr.bf16.gmra.mrb[0].mxu0 %v536
        %v596 = vpop.f32.mrb[0].mxu0
        %v597 = vadd.f32 0.0, %v596
        %v598 = vpop.f32.mrb[0].mxu0
        %v599 = vadd.f32 0.0, %v598
        %v600 = vpop.f32.mrb[0].mxu0
        %v601 = vadd.f32 0.0, %v600
        %v602 = vpop.f32.mrb[0].mxu0
        %v603 = vadd.f32 0.0, %v602
        %604 = vdwg.mxu0
        %605 = vmatprep.subr.bf16.mxu0 %v550
        %606 = vmatpush1.bf16.msra.mxu0 %v547
        %607 = vmatprep.subr.bf16.mxu0 0
        %608 = vmatpush1.bf16.msra.mxu0 0
        %609 = vmatprep.subr.bf16.mxu0 0
        %610 = vmatpush1.bf16.msra.mxu0 0
        %611 = vmatprep.subr.bf16.mxu0 0
        %612 = vmatpush1.bf16.msra.mxu0 0
        %613 = vmatprep.subr.bf16.mxu0 0
        %614 = vmatpush1.bf16.msra.mxu0 0
        %615 = vmatprep.subr.bf16.mxu0 0
        %616 = vmatpush1.bf16.msra.mxu0 0
        %617 = vmatprep.subr.bf16.mxu0 0
        %618 = vmatpush1.bf16.msra.mxu0 0
        %619 = vmatprep.subr.bf16.mxu0 0
        %620 = vmatpush1.bf16.msra.mxu0 0
        %621 = vmatprep.subr.bf16.mxu0 0
        %622 = vmatpush1.bf16.msra.mxu0 0
        %623 = vmatprep.subr.bf16.mxu0 0
        %624 = vmatpush1.bf16.msra.mxu0 0
        %625 = vmatprep.subr.bf16.mxu0 0
        %626 = vmatpush1.bf16.msra.mxu0 0
        %627 = vmatprep.subr.bf16.mxu0 0
        %628 = vmatpush1.bf16.msra.mxu0 0
        %629 = vmatprep.subr.bf16.mxu0 0
        %630 = vmatpush1.bf16.msra.mxu0 0
        %631 = vmatprep.subr.bf16.mxu0 0
        %632 = vmatpush1.bf16.msra.mxu0 0
        %633 = vmatprep.subr.bf16.mxu0 0
        %634 = vmatpush1.bf16.msra.mxu0 0
        %635 = vmatprep.subr.bf16.mxu0 0
        %636 = vmatpush1.bf16.msra.mxu0 0
        %637 = vmatprep.mubr.bf16.mxu0 0
        %638 = vmatmul.mubr.bf16.gmra.mrb[0].mxu0 %v533
        %v639 = vpop.f32.mrb[0].mxu0
        %v640 = vadd.f32 0.0, %v639
        %v641 = vpop.f32.mrb[0].mxu0
        %v642 = vadd.f32 0.0, %v641
        %v643 = vpop.f32.mrb[0].mxu0
        %v644 = vadd.f32 0.0, %v643
        %v645 = vpop.f32.mrb[0].mxu0
        %v646 = vadd.f32 0.0, %v645
        %647 = vmatprep.mubr.bf16.mxu0 0
        %648 = vmatmul.mubr.bf16.gmra.mrb[0].mxu0 %v536
        %v649 = vpop.f32.mrb[0].mxu0
        %v650 = vadd.f32 0.0, %v649
        %v651 = vpop.f32.mrb[0].mxu0
        %v652 = vadd.f32 0.0, %v651
        %v653 = vpop.f32.mrb[0].mxu0
        %v654 = vadd.f32 0.0, %v653
        %v655 = vpop.f32.mrb[0].mxu0
        %v656 = vadd.f32 0.0, %v655
        %657 = vdwg.mxu0
        %658 = vst [vmem:[%s240] sm:$0xff] %v587
        %659 = vst [vmem:[%s240 + $0x8] sm:$0xff] %v589
        %660 = vst [vmem:[%s240 + $0x10] sm:$0xff] %v591
        %661 = vst [vmem:[%s240 + $0x18] sm:$0xff] %v593
        %662 = vst [vmem:[%s240 + $0x20] sm:$0xff] %v597
        %663 = vst [vmem:[%s240 + $0x28] sm:$0xff] %v599
        %664 = vst [vmem:[%s240 + $0x30] sm:$0xff] %v601
        %665 = vst [vmem:[%s240 + $0x38] sm:$0xff] %v603
        %s666 = scalar_lea.vmem %s240, 64
        %667 = vst [vmem:[%s666] sm:$0xff] %v640
        %668 = vst [vmem:[%s666 + $0x8] sm:$0xff] %v642
        %669 = vst [vmem:[%s666 + $0x10] sm:$0xff] %v644
        %670 = vst [vmem:[%s666 + $0x18] sm:$0xff] %v646
        %671 = vst [vmem:[%s666 + $0x20] sm:$0xff] %v650
        %672 = vst [vmem:[%s666 + $0x28] sm:$0xff] %v652
        %673 = vst [vmem:[%s666 + $0x30] sm:$0xff] %v654
        %674 = vst [vmem:[%s666 + $0x38] sm:$0xff] %v656
        %v675 = vld [vmem:[%s234 + $0x4] sm:$0xf]
        %v676 = vmul.f32 %v675, %v246
        %v677 = vadd.f32 %v676, %v248
        %v678 = vmax.f32 %v677, 0.0
        %v680 = vlaneseq
        %v681 = vshrl.u32 %v680, 7
        %v682 = vsub.s32 0, %v681
        %v683 = vrot.slane %v678, %v682
        %v684 = vlaneseq
        %v685 = vshrl.u32 %v684, 7
        %v686 = vsub.s32 1, %v685
        %v687 = vrot.slane %v678, %v686
        %v688 = vlaneseq
        %v689 = vshrl.u32 %v688, 7
        %v690 = vsub.s32 2, %v689
        %v691 = vrot.slane %v678, %v690
        %v692 = vlaneseq
        %v693 = vshrl.u32 %v692, 7
        %v694 = vsub.s32 3, %v693
        %v695 = vrot.slane %v678, %v694
        %700 = vrot.lane.b32.xlu0 %v683, 17
        %v701 = vpop.permute.xlu0 %700
        %702 = vrot.lane.b32.xlu0 %v687, 17
        %v703 = vpop.permute.xlu0 %702
        %704 = vrot.lane.b32.xlu0 %v691, 17
        %v705 = vpop.permute.xlu0 %704
        %706 = vrot.lane.b32.xlu0 %v695, 17
        %v707 = vpop.permute.xlu0 %706
        %v708 = vsel %vm282, %v705, %v707
        %v709 = vsel %vm282, %v703, %v705
        %v710 = vsel %vm282, %v701, %v703
        %v711 = vsel %vm282, %v707, %v701
        %712 = vrot.lane.b32.xlu0 %v683, 16
        %v713 = vpop.permute.xlu0 %712
        %714 = vrot.lane.b32.xlu0 %v687, 16
        %v715 = vpop.permute.xlu0 %714
        %716 = vrot.lane.b32.xlu0 %v691, 16
        %v717 = vpop.permute.xlu0 %716
        %718 = vrot.lane.b32.xlu0 %v695, 16
        %v719 = vpop.permute.xlu0 %718
        %v720 = vsel %vm295, %v717, %v719
        %v721 = vsel %vm295, %v715, %v717
        %v722 = vsel %vm295, %v713, %v715
        %v723 = vsel %vm295, %v719, %v713
        %724 = vrot.lane.b32.xlu0 %v683, 15
        %v725 = vpop.permute.xlu0 %724
        %726 = vrot.lane.b32.xlu0 %v687, 15
        %v727 = vpop.permute.xlu0 %726
        %728 = vrot.lane.b32.xlu0 %v691, 15
        %v729 = vpop.permute.xlu0 %728
        %730 = vrot.lane.b32.xlu0 %v695, 15
        %v731 = vpop.permute.xlu0 %730
        %v732 = vsel %vm308, %v729, %v731
        %v733 = vsel %vm308, %v727, %v729
        %v734 = vsel %vm308, %v725, %v727
        %v735 = vsel %vm308, %v731, %v725
        %736 = vrot.lane.b32.xlu0 %v683, 1
        %v737 = vpop.permute.xlu0 %736
        %738 = vrot.lane.b32.xlu0 %v687, 1
        %v739 = vpop.permute.xlu0 %738
        %740 = vrot.lane.b32.xlu0 %v691, 1
        %v741 = vpop.permute.xlu0 %740
        %742 = vrot.lane.b32.xlu0 %v695, 1
        %v743 = vpop.permute.xlu0 %742
        %v744 = vsel %vm321, %v741, %v743
        %v745 = vsel %vm321, %v739, %v741
        %v746 = vsel %vm321, %v737, %v739
        %v747 = vsel %vm321, %v743, %v737
        %748 = vrot.lane.b32.xlu0 %v683, 127
        %v749 = vpop.permute.xlu0 %748
        %750 = vrot.lane.b32.xlu0 %v687, 127
        %v751 = vpop.permute.xlu0 %750
        %752 = vrot.lane.b32.xlu0 %v691, 127
        %v753 = vpop.permute.xlu0 %752
        %754 = vrot.lane.b32.xlu0 %v695, 127
        %v755 = vpop.permute.xlu0 %754
        %v756 = vsel %vm334, %v753, %v755
        %v757 = vsel %vm334, %v751, %v753
        %v758 = vsel %vm334, %v749, %v751
        %v759 = vsel %vm334, %v755, %v749
        %760 = vrot.lane.b32.xlu0 %v683, 113
        %v761 = vpop.permute.xlu0 %760
        %762 = vrot.lane.b32.xlu0 %v687, 113
        %v763 = vpop.permute.xlu0 %762
        %764 = vrot.lane.b32.xlu0 %v691, 113
        %v765 = vpop.permute.xlu0 %764
        %766 = vrot.lane.b32.xlu0 %v695, 113
        %v767 = vpop.permute.xlu0 %766
        %v768 = vsel %vm347, %v765, %v767
        %v769 = vsel %vm347, %v763, %v765
        %v770 = vsel %vm347, %v761, %v763
        %v771 = vsel %vm347, %v767, %v761
        %772 = vrot.lane.b32.xlu0 %v683, 112
        %v773 = vpop.permute.xlu0 %772
        %774 = vrot.lane.b32.xlu0 %v687, 112
        %v775 = vpop.permute.xlu0 %774
        %776 = vrot.lane.b32.xlu0 %v691, 112
        %v777 = vpop.permute.xlu0 %776
        %778 = vrot.lane.b32.xlu0 %v695, 112
        %v779 = vpop.permute.xlu0 %778
        %v780 = vsel %vm360, %v777, %v779
        %v781 = vsel %vm360, %v775, %v777
        %v782 = vsel %vm360, %v773, %v775
        %v783 = vsel %vm360, %v779, %v773
        %784 = vrot.lane.b32.xlu0 %v683, 111
        %v785 = vpop.permute.xlu0 %784
        %786 = vrot.lane.b32.xlu0 %v687, 111
        %v787 = vpop.permute.xlu0 %786
        %788 = vrot.lane.b32.xlu0 %v691, 111
        %v789 = vpop.permute.xlu0 %788
        %790 = vrot.lane.b32.xlu0 %v695, 111
        %v791 = vpop.permute.xlu0 %790
        %v792 = vsel %vm373, %v789, %v791
        %v793 = vsel %vm373, %v787, %v789
        %v794 = vsel %vm373, %v785, %v787
        %v795 = vsel %vm373, %v791, %v785
        %v800 = vrot.slane %v723, 7
        %v801 = vrot.slane %v722, 7
        %v802 = vrot.slane %v721, 7
        %v803 = vrot.slane %v720, 7
        %v812 = vrot.slane %v735, 6
        %v813 = vrot.slane %v734, 6
        %v814 = vrot.slane %v733, 6
        %v815 = vrot.slane %v732, 6
        %v824 = vrot.slane %v747, 5
        %v825 = vrot.slane %v746, 5
        %v826 = vrot.slane %v745, 5
        %v827 = vrot.slane %v744, 5
        %v836 = vrot.slane %v758, 3
        %v837 = vrot.slane %v757, 3
        %v838 = vrot.slane %v756, 3
        %v839 = vrot.slane %v759, 3
        %v848 = vrot.slane %v770, 2
        %v849 = vrot.slane %v769, 2
        %v850 = vrot.slane %v768, 2
        %v851 = vrot.slane %v771, 2
        %v860 = vrot.slane %v782, 1
        %v861 = vrot.slane %v781, 1
        %v862 = vrot.slane %v780, 1
        %v863 = vrot.slane %v783, 1
        %v868 = vsel %vm450, %v711, %v800
        %v869 = vsel %vm450, %v710, %v801
        %v870 = vsel %vm450, %v709, %v802
        %v871 = vsel %vm450, %v708, %v803
        %v872 = vsel %vm455, %v868, %v812
        %v873 = vsel %vm455, %v869, %v813
        %v874 = vsel %vm455, %v870, %v814
        %v875 = vsel %vm455, %v871, %v815
        %v876 = vsel %vm460, %v872, %v824
        %v877 = vsel %vm460, %v873, %v825
        %v878 = vsel %vm460, %v874, %v826
        %v879 = vsel %vm460, %v875, %v827
        %v880 = vsel %vm465, %v876, %v683
        %v881 = vsel %vm465, %v877, %v687
        %v882 = vsel %vm465, %v878, %v691
        %v883 = vsel %vm465, %v879, %v695
        %v884 = vsel %vm470, %v880, %v836
        %v885 = vsel %vm470, %v881, %v837
        %v886 = vsel %vm470, %v882, %v838
        %v887 = vsel %vm470, %v883, %v839
        %v888 = vsel %vm475, %v884, %v848
        %v889 = vsel %vm475, %v885, %v849
        %v890 = vsel %vm475, %v886, %v850
        %v891 = vsel %vm475, %v887, %v851
        %v892 = vsel %vm480, %v888, %v860
        %v893 = vsel %vm480, %v889, %v861
        %v894 = vsel %vm480, %v890, %v862
        %v895 = vsel %vm480, %v891, %v863
        %v896 = vpack.c.bf16 %v794, %v892
        %v897 = vpack.c.bf16 %v793, %v893
        %v898 = vpack.c.bf16 %v792, %v894
        %v899 = vpack.c.bf16 %v795, %v895
        %v900 = vld [vmem:[#allocation4] sm:$0xff]
        %v901 = vld [vmem:[#allocation4 + $0x8] sm:$0xff]
        %v902 = vld [vmem:[#allocation4 + $0x10] sm:$0x11]
        %v903 = vld [vmem:[#allocation4 + $0x18] sm:$0x11]
        %v908 = vunpack.c.l.b16 %v900
        %v909 = vunpack.c.h.b16 %v900
        %v910 = vunpack.c.l.b16 %v901
        %v911 = vunpack.c.h.b16 %v901
        %v912 = vunpack.c.l.b16 %v902
        %v913 = vunpack.c.h.b16 %v902
        %v914 = vunpack.c.l.b16 %v903
        %v915 = vunpack.c.h.b16 %v903
        %v916 = vpack.c.b16 %v912, %v908
        %v917 = vpack.c.b16 %v913, %v909
        %v918 = vpack.c.b16 %v914, %v910
        %v919 = vpack.c.b16 %v915, %v911
        %v924 = vmul.bf16 %v896, %v916
        %v925 = vmul.bf16 %v897, %v917
        %v926 = vmul.bf16 %v898, %v918
        %v927 = vmul.bf16 %v899, %v919
        %v928 = vld [vmem:[%s3] sm:$0xf]
        %v929 = vld [vmem:[%s3 + $0x4] sm:$0xf]
        %v930 = vld [vmem:[%s3 + $0x8] sm:$0xf]
        %v931 = vld [vmem:[%s3 + $0xc] sm:$0xf]
        %v936 = vunpack.c.l.b16 %v928
        %v937 = vunpack.c.l.b16 %v929
        %v938 = vunpack.c.l.b16 %v930
        %v939 = vunpack.c.l.b16 %v931
        %v940 = vpack.c.b16 %v937, %v936
        %v941 = vpack.c.b16 %v939, %v938
        %v943 = vsel %vm531, %v940, 0
        %v946 = vsel %vm531, %v941, 0
        %v949 = vand.u32 %v924, %v539
        %v952 = vand.u32 %v925, %v539
        %v955 = vand.u32 %v926, %v539
        %v958 = vand.u32 %v927, %v539
        %960 = vmatprep.subr.bf16.mxu0 %v952
        %961 = vmatpush1.bf16.msra.mxu0 %v949
        %962 = vmatprep.subr.bf16.mxu0 0
        %963 = vmatpush1.bf16.msra.mxu0 0
        %964 = vmatprep.subr.bf16.mxu0 0
        %965 = vmatpush1.bf16.msra.mxu0 0
        %966 = vmatprep.subr.bf16.mxu0 0
        %967 = vmatpush1.bf16.msra.mxu0 0
        %968 = vmatprep.subr.bf16.mxu0 0
        %969 = vmatpush1.bf16.msra.mxu0 0
        %970 = vmatprep.subr.bf16.mxu0 0
        %971 = vmatpush1.bf16.msra.mxu0 0
        %972 = vmatprep.subr.bf16.mxu0 0
        %973 = vmatpush1.bf16.msra.mxu0 0
        %974 = vmatprep.subr.bf16.mxu0 0
        %975 = vmatpush1.bf16.msra.mxu0 0
        %976 = vmatprep.subr.bf16.mxu0 0
        %977 = vmatpush1.bf16.msra.mxu0 0
        %978 = vmatprep.subr.bf16.mxu0 0
        %979 = vmatpush1.bf16.msra.mxu0 0
        %980 = vmatprep.subr.bf16.mxu0 0
        %981 = vmatpush1.bf16.msra.mxu0 0
        %982 = vmatprep.subr.bf16.mxu0 0
        %983 = vmatpush1.bf16.msra.mxu0 0
        %984 = vmatprep.subr.bf16.mxu0 0
        %985 = vmatpush1.bf16.msra.mxu0 0
        %986 = vmatprep.subr.bf16.mxu0 0
        %987 = vmatpush1.bf16.msra.mxu0 0
        %988 = vmatprep.subr.bf16.mxu0 0
        %989 = vmatpush1.bf16.msra.mxu0 0
        %990 = vmatprep.subr.bf16.mxu0 0
        %991 = vmatpush1.bf16.msra.mxu0 0
        %992 = vmatprep.mubr.bf16.mxu0 0
        %993 = vmatmul.mubr.bf16.gmra.mrb[0].mxu0 %v943
        %v994 = vpop.f32.mrb[0].mxu0
        %v995 = vadd.f32 0.0, %v994
        %v996 = vpop.f32.mrb[0].mxu0
        %v997 = vadd.f32 0.0, %v996
        %v998 = vpop.f32.mrb[0].mxu0
        %v999 = vadd.f32 0.0, %v998
        %v1000 = vpop.f32.mrb[0].mxu0
        %v1001 = vadd.f32 0.0, %v1000
        %1002 = vmatprep.mubr.bf16.mxu0 0
        %1003 = vmatmul.mubr.bf16.gmra.mrb[0].mxu0 %v946
        %v1004 = vpop.f32.mrb[0].mxu0
        %v1005 = vadd.f32 0.0, %v1004
        %v1006 = vpop.f32.mrb[0].mxu0
        %v1007 = vadd.f32 0.0, %v1006
        %v1008 = vpop.f32.mrb[0].mxu0
        %v1009 = vadd.f32 0.0, %v1008
        %v1010 = vpop.f32.mrb[0].mxu0
        %v1011 = vadd.f32 0.0, %v1010
        %1012 = vdwg.mxu0
        %1013 = vmatprep.subr.bf16.mxu0 %v958
        %1014 = vmatpush1.bf16.msra.mxu0 %v955
        %1015 = vmatprep.subr.bf16.mxu0 0
        %1016 = vmatpush1.bf16.msra.mxu0 0
        %1017 = vmatprep.subr.bf16.mxu0 0
        %1018 = vmatpush1.bf16.msra.mxu0 0
        %1019 = vmatprep.subr.bf16.mxu0 0
        %1020 = vmatpush1.bf16.msra.mxu0 0
        %1021 = vmatprep.subr.bf16.mxu0 0
        %1022 = vmatpush1.bf16.msra.mxu0 0
        %1023 = vmatprep.subr.bf16.mxu0 0
        %1024 = vmatpush1.bf16.msra.mxu0 0
        %1025 = vmatprep.subr.bf16.mxu0 0
        %1026 = vmatpush1.bf16.msra.mxu0 0
        %1027 = vmatprep.subr.bf16.mxu0 0
        %1028 = vmatpush1.bf16.msra.mxu0 0
        %1029 = vmatprep.subr.bf16.mxu0 0
        %1030 = vmatpush1.bf16.msra.mxu0 0
        %1031 = vmatprep.subr.bf16.mxu0 0
        %1032 = vmatpush1.bf16.msra.mxu0 0
        %1033 = vmatprep.subr.bf16.mxu0 0
        %1034 = vmatpush1.bf16.msra.mxu0 0
        %1035 = vmatprep.subr.bf16.mxu0 0
        %1036 = vmatpush1.bf16.msra.mxu0 0
        %1037 = vmatprep.subr.bf16.mxu0 0
        %1038 = vmatpush1.bf16.msra.mxu0 0
        %1039 = vmatprep.subr.bf16.mxu0 0
        %1040 = vmatpush1.bf16.msra.mxu0 0
        %1041 = vmatprep.subr.bf16.mxu0 0
        %1042 = vmatpush1.bf16.msra.mxu0 0
        %1043 = vmatprep.subr.bf16.mxu0 0
        %1044 = vmatpush1.bf16.msra.mxu0 0
        %1045 = vmatprep.mubr.bf16.mxu0 0
        %1046 = vmatmul.mubr.bf16.gmra.mrb[0].mxu0 %v943
        %v1047 = vpop.f32.mrb[0].mxu0
        %v1048 = vadd.f32 0.0, %v1047
        %v1049 = vpop.f32.mrb[0].mxu0
        %v1050 = vadd.f32 0.0, %v1049
        %v1051 = vpop.f32.mrb[0].mxu0
        %v1052 = vadd.f32 0.0, %v1051
        %v1053 = vpop.f32.mrb[0].mxu0
        %v1054 = vadd.f32 0.0, %v1053
        %1055 = vmatprep.mubr.bf16.mxu0 0
        %1056 = vmatmul.mubr.bf16.gmra.mrb[0].mxu0 %v946
        %v1057 = vpop.f32.mrb[0].mxu0
        %v1058 = vadd.f32 0.0, %v1057
        %v1059 = vpop.f32.mrb[0].mxu0
        %v1060 = vadd.f32 0.0, %v1059
        %v1061 = vpop.f32.mrb[0].mxu0
        %v1062 = vadd.f32 0.0, %v1061
        %v1063 = vpop.f32.mrb[0].mxu0
        %v1064 = vadd.f32 0.0, %v1063
        %1065 = vdwg.mxu0
        %s1066 = scalar_lea.vmem %s240, 128
        %1067 = vst [vmem:[%s1066] sm:$0xff] %v995
        %1068 = vst [vmem:[%s1066 + $0x8] sm:$0xff] %v997
        %1069 = vst [vmem:[%s1066 + $0x10] sm:$0xff] %v999
        %1070 = vst [vmem:[%s1066 + $0x18] sm:$0xff] %v1001
        %1071 = vst [vmem:[%s1066 + $0x20] sm:$0xff] %v1005
        %1072 = vst [vmem:[%s1066 + $0x28] sm:$0xff] %v1007
        %1073 = vst [vmem:[%s1066 + $0x30] sm:$0xff] %v1009
        %1074 = vst [vmem:[%s1066 + $0x38] sm:$0xff] %v1011
        %s1075 = scalar_lea.vmem %s240, 192
        %1076 = vst [vmem:[%s1075] sm:$0xff] %v1048
        %1077 = vst [vmem:[%s1075 + $0x8] sm:$0xff] %v1050
        %1078 = vst [vmem:[%s1075 + $0x10] sm:$0xff] %v1052
        %1079 = vst [vmem:[%s1075 + $0x18] sm:$0xff] %v1054
        %1080 = vst [vmem:[%s1075 + $0x20] sm:$0xff] %v1058
        %1081 = vst [vmem:[%s1075 + $0x28] sm:$0xff] %v1060
        %1082 = vst [vmem:[%s1075 + $0x30] sm:$0xff] %v1062
        %1083 = vst [vmem:[%s1075 + $0x38] sm:$0xff] %v1064
        %v1084 = vld [vmem:[%s234 + $0x8] sm:$0xf]
        %v1085 = vmul.f32 %v1084, %v246
        %v1086 = vadd.f32 %v1085, %v248
        %v1087 = vmax.f32 %v1086, 0.0
        %v1089 = vlaneseq
        %v1090 = vshrl.u32 %v1089, 7
        %v1091 = vsub.s32 0, %v1090
        %v1092 = vrot.slane %v1087, %v1091
        %v1093 = vlaneseq
        %v1094 = vshrl.u32 %v1093, 7
        %v1095 = vsub.s32 1, %v1094
        %v1096 = vrot.slane %v1087, %v1095
        %v1097 = vlaneseq
        %v1098 = vshrl.u32 %v1097, 7
        %v1099 = vsub.s32 2, %v1098
        %v1100 = vrot.slane %v1087, %v1099
        %v1101 = vlaneseq
        %v1102 = vshrl.u32 %v1101, 7
        %v1103 = vsub.s32 3, %v1102
        %v1104 = vrot.slane %v1087, %v1103
        %1109 = vrot.lane.b32.xlu0 %v1092, 17
        %v1110 = vpop.permute.xlu0 %1109
        %1111 = vrot.lane.b32.xlu0 %v1096, 17
        %v1112 = vpop.permute.xlu0 %1111
        %1113 = vrot.lane.b32.xlu0 %v1100, 17
        %v1114 = vpop.permute.xlu0 %1113
        %1115 = vrot.lane.b32.xlu0 %v1104, 17
        %v1116 = vpop.permute.xlu0 %1115
        %v1117 = vsel %vm282, %v1114, %v1116
        %v1118 = vsel %vm282, %v1112, %v1114
        %v1119 = vsel %vm282, %v1110, %v1112
        %v1120 = vsel %vm282, %v1116, %v1110
        %1121 = vrot.lane.b32.xlu0 %v1092, 16
        %v1122 = vpop.permute.xlu0 %1121
        %1123 = vrot.lane.b32.xlu0 %v1096, 16
        %v1124 = vpop.permute.xlu0 %1123
        %1125 = vrot.lane.b32.xlu0 %v1100, 16
        %v1126 = vpop.permute.xlu0 %1125
        %1127 = vrot.lane.b32.xlu0 %v1104, 16
        %v1128 = vpop.permute.xlu0 %1127
        %v1129 = vsel %vm295, %v1126, %v1128
        %v1130 = vsel %vm295, %v1124, %v1126
        %v1131 = vsel %vm295, %v1122, %v1124
        %v1132 = vsel %vm295, %v1128, %v1122
        %1133 = vrot.lane.b32.xlu0 %v1092, 15
        %v1134 = vpop.permute.xlu0 %1133
        %1135 = vrot.lane.b32.xlu0 %v1096, 15
        %v1136 = vpop.permute.xlu0 %1135
        %1137 = vrot.lane.b32.xlu0 %v1100, 15
        %v1138 = vpop.permute.xlu0 %1137
        %1139 = vrot.lane.b32.xlu0 %v1104, 15
        %v1140 = vpop.permute.xlu0 %1139
        %v1141 = vsel %vm308, %v1138, %v1140
        %v1142 = vsel %vm308, %v1136, %v1138
        %v1143 = vsel %vm308, %v1134, %v1136
        %v1144 = vsel %vm308, %v1140, %v1134
        %1145 = vrot.lane.b32.xlu0 %v1092, 1
        %v1146 = vpop.permute.xlu0 %1145
        %1147 = vrot.lane.b32.xlu0 %v1096, 1
        %v1148 = vpop.permute.xlu0 %1147
        %1149 = vrot.lane.b32.xlu0 %v1100, 1
        %v1150 = vpop.permute.xlu0 %1149
        %1151 = vrot.lane.b32.xlu0 %v1104, 1
        %v1152 = vpop.permute.xlu0 %1151
        %v1153 = vsel %vm321, %v1150, %v1152
        %v1154 = vsel %vm321, %v1148, %v1150
        %v1155 = vsel %vm321, %v1146, %v1148
        %v1156 = vsel %vm321, %v1152, %v1146
        %1157 = vrot.lane.b32.xlu0 %v1092, 127
        %v1158 = vpop.permute.xlu0 %1157
        %1159 = vrot.lane.b32.xlu0 %v1096, 127
        %v1160 = vpop.permute.xlu0 %1159
        %1161 = vrot.lane.b32.xlu0 %v1100, 127
        %v1162 = vpop.permute.xlu0 %1161
        %1163 = vrot.lane.b32.xlu0 %v1104, 127
        %v1164 = vpop.permute.xlu0 %1163
        %v1165 = vsel %vm334, %v1162, %v1164
        %v1166 = vsel %vm334, %v1160, %v1162
        %v1167 = vsel %vm334, %v1158, %v1160
        %v1168 = vsel %vm334, %v1164, %v1158
        %1169 = vrot.lane.b32.xlu0 %v1092, 113
        %v1170 = vpop.permute.xlu0 %1169
        %1171 = vrot.lane.b32.xlu0 %v1096, 113
        %v1172 = vpop.permute.xlu0 %1171
        %1173 = vrot.lane.b32.xlu0 %v1100, 113
        %v1174 = vpop.permute.xlu0 %1173
        %1175 = vrot.lane.b32.xlu0 %v1104, 113
        %v1176 = vpop.permute.xlu0 %1175
        %v1177 = vsel %vm347, %v1174, %v1176
        %v1178 = vsel %vm347, %v1172, %v1174
        %v1179 = vsel %vm347, %v1170, %v1172
        %v1180 = vsel %vm347, %v1176, %v1170
        %1181 = vrot.lane.b32.xlu0 %v1092, 112
        %v1182 = vpop.permute.xlu0 %1181
        %1183 = vrot.lane.b32.xlu0 %v1096, 112
        %v1184 = vpop.permute.xlu0 %1183
        %1185 = vrot.lane.b32.xlu0 %v1100, 112
        %v1186 = vpop.permute.xlu0 %1185
        %1187 = vrot.lane.b32.xlu0 %v1104, 112
        %v1188 = vpop.permute.xlu0 %1187
        %v1189 = vsel %vm360, %v1186, %v1188
        %v1190 = vsel %vm360, %v1184, %v1186
        %v1191 = vsel %vm360, %v1182, %v1184
        %v1192 = vsel %vm360, %v1188, %v1182
        %1193 = vrot.lane.b32.xlu0 %v1092, 111
        %v1194 = vpop.permute.xlu0 %1193
        %1195 = vrot.lane.b32.xlu0 %v1096, 111
        %v1196 = vpop.permute.xlu0 %1195
        %1197 = vrot.lane.b32.xlu0 %v1100, 111
        %v1198 = vpop.permute.xlu0 %1197
        %1199 = vrot.lane.b32.xlu0 %v1104, 111
        %v1200 = vpop.permute.xlu0 %1199
        %v1201 = vsel %vm373, %v1198, %v1200
        %v1202 = vsel %vm373, %v1196, %v1198
        %v1203 = vsel %vm373, %v1194, %v1196
        %v1204 = vsel %vm373, %v1200, %v1194
        %v1209 = vrot.slane %v1132, 7
        %v1210 = vrot.slane %v1131, 7
        %v1211 = vrot.slane %v1130, 7
        %v1212 = vrot.slane %v1129, 7
        %v1221 = vrot.slane %v1144, 6
        %v1222 = vrot.slane %v1143, 6
        %v1223 = vrot.slane %v1142, 6
        %v1224 = vrot.slane %v1141, 6
        %v1233 = vrot.slane %v1156, 5
        %v1234 = vrot.slane %v1155, 5
        %v1235 = vrot.slane %v1154, 5
        %v1236 = vrot.slane %v1153, 5
        %v1245 = vrot.slane %v1167, 3
        %v1246 = vrot.slane %v1166, 3
        %v1247 = vrot.slane %v1165, 3
        %v1248 = vrot.slane %v1168, 3
        %v1257 = vrot.slane %v1179, 2
        %v1258 = vrot.slane %v1178, 2
        %v1259 = vrot.slane %v1177, 2
        %v1260 = vrot.slane %v1180, 2
        %v1269 = vrot.slane %v1191, 1
        %v1270 = vrot.slane %v1190, 1
        %v1271 = vrot.slane %v1189, 1
        %v1272 = vrot.slane %v1192, 1
        %v1277 = vsel %vm450, %v1120, %v1209
        %v1278 = vsel %vm450, %v1119, %v1210
        %v1279 = vsel %vm450, %v1118, %v1211
        %v1280 = vsel %vm450, %v1117, %v1212
        %v1281 = vsel %vm455, %v1277, %v1221
        %v1282 = vsel %vm455, %v1278, %v1222
        %v1283 = vsel %vm455, %v1279, %v1223
        %v1284 = vsel %vm455, %v1280, %v1224
        %v1285 = vsel %vm460, %v1281, %v1233
        %v1286 = vsel %vm460, %v1282, %v1234
        %v1287 = vsel %vm460, %v1283, %v1235
        %v1288 = vsel %vm460, %v1284, %v1236
        %v1289 = vsel %vm465, %v1285, %v1092
        %v1290 = vsel %vm465, %v1286, %v1096
        %v1291 = vsel %vm465, %v1287, %v1100
        %v1292 = vsel %vm465, %v1288, %v1104
        %v1293 = vsel %vm470, %v1289, %v1245
        %v1294 = vsel %vm470, %v1290, %v1246
        %v1295 = vsel %vm470, %v1291, %v1247
        %v1296 = vsel %vm470, %v1292, %v1248
        %v1297 = vsel %vm475, %v1293, %v1257
        %v1298 = vsel %vm475, %v1294, %v1258
        %v1299 = vsel %vm475, %v1295, %v1259
        %v1300 = vsel %vm475, %v1296, %v1260
        %v1301 = vsel %vm480, %v1297, %v1269
        %v1302 = vsel %vm480, %v1298, %v1270
        %v1303 = vsel %vm480, %v1299, %v1271
        %v1304 = vsel %vm480, %v1300, %v1272
        %v1305 = vpack.c.bf16 %v1203, %v1301
        %v1306 = vpack.c.bf16 %v1202, %v1302
        %v1307 = vpack.c.bf16 %v1201, %v1303
        %v1308 = vpack.c.bf16 %v1204, %v1304
        %v1309 = vld [vmem:[#allocation4] sm:$0xff]
        %v1310 = vld [vmem:[#allocation4 + $0x8] sm:$0xff]
        %v1311 = vld [vmem:[#allocation4 + $0x10] sm:$0x11]
        %v1312 = vld [vmem:[#allocation4 + $0x18] sm:$0x11]
        %v1317 = vunpack.c.l.b16 %v1309
        %v1318 = vunpack.c.h.b16 %v1309
        %v1319 = vunpack.c.l.b16 %v1310
        %v1320 = vunpack.c.h.b16 %v1310
        %v1321 = vunpack.c.l.b16 %v1311
        %v1322 = vunpack.c.h.b16 %v1311
        %v1323 = vunpack.c.l.b16 %v1312
        %v1324 = vunpack.c.h.b16 %v1312
        %v1325 = vpack.c.b16 %v1321, %v1317
        %v1326 = vpack.c.b16 %v1322, %v1318
        %v1327 = vpack.c.b16 %v1323, %v1319
        %v1328 = vpack.c.b16 %v1324, %v1320
        %v1333 = vmul.bf16 %v1305, %v1325
        %v1334 = vmul.bf16 %v1306, %v1326
        %v1335 = vmul.bf16 %v1307, %v1327
        %v1336 = vmul.bf16 %v1308, %v1328
        %v1337 = vld [vmem:[%s3] sm:$0xf]
        %v1338 = vld [vmem:[%s3 + $0x4] sm:$0xf]
        %v1339 = vld [vmem:[%s3 + $0x8] sm:$0xf]
        %v1340 = vld [vmem:[%s3 + $0xc] sm:$0xf]
        %v1345 = vunpack.c.l.b16 %v1337
        %v1346 = vunpack.c.l.b16 %v1338
        %v1347 = vunpack.c.l.b16 %v1339
        %v1348 = vunpack.c.l.b16 %v1340
        %v1349 = vpack.c.b16 %v1346, %v1345
        %v1350 = vpack.c.b16 %v1348, %v1347
        %v1352 = vsel %vm531, %v1349, 0
        %v1355 = vsel %vm531, %v1350, 0
        %v1358 = vand.u32 %v1333, %v539
        %v1361 = vand.u32 %v1334, %v539
        %v1364 = vand.u32 %v1335, %v539
        %v1367 = vand.u32 %v1336, %v539
        %1369 = vmatprep.subr.bf16.mxu0 %v1361
        %1370 = vmatpush1.bf16.msra.mxu0 %v1358
        %1371 = vmatprep.subr.bf16.mxu0 0
        %1372 = vmatpush1.bf16.msra.mxu0 0
        %1373 = vmatprep.subr.bf16.mxu0 0
        %1374 = vmatpush1.bf16.msra.mxu0 0
        %1375 = vmatprep.subr.bf16.mxu0 0
        %1376 = vmatpush1.bf16.msra.mxu0 0
        %1377 = vmatprep.subr.bf16.mxu0 0
        %1378 = vmatpush1.bf16.msra.mxu0 0
        %1379 = vmatprep.subr.bf16.mxu0 0
        %1380 = vmatpush1.bf16.msra.mxu0 0
        %1381 = vmatprep.subr.bf16.mxu0 0
        %1382 = vmatpush1.bf16.msra.mxu0 0
        %1383 = vmatprep.subr.bf16.mxu0 0
        %1384 = vmatpush1.bf16.msra.mxu0 0
        %1385 = vmatprep.subr.bf16.mxu0 0
        %1386 = vmatpush1.bf16.msra.mxu0 0
        %1387 = vmatprep.subr.bf16.mxu0 0
        %1388 = vmatpush1.bf16.msra.mxu0 0
        %1389 = vmatprep.subr.bf16.mxu0 0
        %1390 = vmatpush1.bf16.msra.mxu0 0
        %1391 = vmatprep.subr.bf16.mxu0 0
        %1392 = vmatpush1.bf16.msra.mxu0 0
        %1393 = vmatprep.subr.bf16.mxu0 0
        %1394 = vmatpush1.bf16.msra.mxu0 0
        %1395 = vmatprep.subr.bf16.mxu0 0
        %1396 = vmatpush1.bf16.msra.mxu0 0
        %1397 = vmatprep.subr.bf16.mxu0 0
        %1398 = vmatpush1.bf16.msra.mxu0 0
        %1399 = vmatprep.subr.bf16.mxu0 0
        %1400 = vmatpush1.bf16.msra.mxu0 0
        %1401 = vmatprep.mubr.bf16.mxu0 0
        %1402 = vmatmul.mubr.bf16.gmra.mrb[0].mxu0 %v1352
        %v1403 = vpop.f32.mrb[0].mxu0
        %v1404 = vadd.f32 0.0, %v1403
        %v1405 = vpop.f32.mrb[0].mxu0
        %v1406 = vadd.f32 0.0, %v1405
        %v1407 = vpop.f32.mrb[0].mxu0
        %v1408 = vadd.f32 0.0, %v1407
        %v1409 = vpop.f32.mrb[0].mxu0
        %v1410 = vadd.f32 0.0, %v1409
        %1411 = vmatprep.mubr.bf16.mxu0 0
        %1412 = vmatmul.mubr.bf16.gmra.mrb[0].mxu0 %v1355
        %v1413 = vpop.f32.mrb[0].mxu0
        %v1414 = vadd.f32 0.0, %v1413
        %v1415 = vpop.f32.mrb[0].mxu0
        %v1416 = vadd.f32 0.0, %v1415
        %v1417 = vpop.f32.mrb[0].mxu0
        %v1418 = vadd.f32 0.0, %v1417
        %v1419 = vpop.f32.mrb[0].mxu0
        %v1420 = vadd.f32 0.0, %v1419
        %1421 = vdwg.mxu0
        %1422 = vmatprep.subr.bf16.mxu0 %v1367
        %1423 = vmatpush1.bf16.msra.mxu0 %v1364
        %1424 = vmatprep.subr.bf16.mxu0 0
        %1425 = vmatpush1.bf16.msra.mxu0 0
        %1426 = vmatprep.subr.bf16.mxu0 0
        %1427 = vmatpush1.bf16.msra.mxu0 0
        %1428 = vmatprep.subr.bf16.mxu0 0
        %1429 = vmatpush1.bf16.msra.mxu0 0
        %1430 = vmatprep.subr.bf16.mxu0 0
        %1431 = vmatpush1.bf16.msra.mxu0 0
        %1432 = vmatprep.subr.bf16.mxu0 0
        %1433 = vmatpush1.bf16.msra.mxu0 0
        %1434 = vmatprep.subr.bf16.mxu0 0
        %1435 = vmatpush1.bf16.msra.mxu0 0
        %1436 = vmatprep.subr.bf16.mxu0 0
        %1437 = vmatpush1.bf16.msra.mxu0 0
        %1438 = vmatprep.subr.bf16.mxu0 0
        %1439 = vmatpush1.bf16.msra.mxu0 0
        %1440 = vmatprep.subr.bf16.mxu0 0
        %1441 = vmatpush1.bf16.msra.mxu0 0
        %1442 = vmatprep.subr.bf16.mxu0 0
        %1443 = vmatpush1.bf16.msra.mxu0 0
        %1444 = vmatprep.subr.bf16.mxu0 0
        %1445 = vmatpush1.bf16.msra.mxu0 0
        %1446 = vmatprep.subr.bf16.mxu0 0
        %1447 = vmatpush1.bf16.msra.mxu0 0
        %1448 = vmatprep.subr.bf16.mxu0 0
        %1449 = vmatpush1.bf16.msra.mxu0 0
        %1450 = vmatprep.subr.bf16.mxu0 0
        %1451 = vmatpush1.bf16.msra.mxu0 0
        %1452 = vmatprep.subr.bf16.mxu0 0
        %1453 = vmatpush1.bf16.msra.mxu0 0
        %1454 = vmatprep.mubr.bf16.mxu0 0
        %1455 = vmatmul.mubr.bf16.gmra.mrb[0].mxu0 %v1352
        %v1456 = vpop.f32.mrb[0].mxu0
        %v1457 = vadd.f32 0.0, %v1456
        %v1458 = vpop.f32.mrb[0].mxu0
        %v1459 = vadd.f32 0.0, %v1458
        %v1460 = vpop.f32.mrb[0].mxu0
        %v1461 = vadd.f32 0.0, %v1460
        %v1462 = vpop.f32.mrb[0].mxu0
        %v1463 = vadd.f32 0.0, %v1462
        %1464 = vmatprep.mubr.bf16.mxu0 0
        %1465 = vmatmul.mubr.bf16.gmra.mrb[0].mxu0 %v1355
        %v1466 = vpop.f32.mrb[0].mxu0
        %v1467 = vadd.f32 0.0, %v1466
        %v1468 = vpop.f32.mrb[0].mxu0
        %v1469 = vadd.f32 0.0, %v1468
        %v1470 = vpop.f32.mrb[0].mxu0
        %v1471 = vadd.f32 0.0, %v1470
        %v1472 = vpop.f32.mrb[0].mxu0
        %v1473 = vadd.f32 0.0, %v1472
        %1474 = vdwg.mxu0
        %s1475 = scalar_lea.vmem %s240, 256
        %1476 = vst [vmem:[%s1475] sm:$0xff] %v1404
        %1477 = vst [vmem:[%s1475 + $0x8] sm:$0xff] %v1406
        %1478 = vst [vmem:[%s1475 + $0x10] sm:$0xff] %v1408
        %1479 = vst [vmem:[%s1475 + $0x18] sm:$0xff] %v1410
        %1480 = vst [vmem:[%s1475 + $0x20] sm:$0xff] %v1414
        %1481 = vst [vmem:[%s1475 + $0x28] sm:$0xff] %v1416
        %1482 = vst [vmem:[%s1475 + $0x30] sm:$0xff] %v1418
        %1483 = vst [vmem:[%s1475 + $0x38] sm:$0xff] %v1420
        %s1484 = scalar_lea.vmem %s240, 320
        %1485 = vst [vmem:[%s1484] sm:$0xff] %v1457
        %1486 = vst [vmem:[%s1484 + $0x8] sm:$0xff] %v1459
        %1487 = vst [vmem:[%s1484 + $0x10] sm:$0xff] %v1461
        %1488 = vst [vmem:[%s1484 + $0x18] sm:$0xff] %v1463
        %1489 = vst [vmem:[%s1484 + $0x20] sm:$0xff] %v1467
        %1490 = vst [vmem:[%s1484 + $0x28] sm:$0xff] %v1469
        %1491 = vst [vmem:[%s1484 + $0x30] sm:$0xff] %v1471
        %1492 = vst [vmem:[%s1484 + $0x38] sm:$0xff] %v1473
        %v1493 = vld [vmem:[%s234 + $0xc] sm:$0xf]
        %v1494 = vmul.f32 %v1493, %v246
        %v1495 = vadd.f32 %v1494, %v248
        %v1496 = vmax.f32 %v1495, 0.0
        %v1498 = vlaneseq
        %v1499 = vshrl.u32 %v1498, 7
        %v1500 = vsub.s32 0, %v1499
        %v1501 = vrot.slane %v1496, %v1500
        %v1502 = vlaneseq
        %v1503 = vshrl.u32 %v1502, 7
        %v1504 = vsub.s32 1, %v1503
        %v1505 = vrot.slane %v1496, %v1504
        %v1506 = vlaneseq
        %v1507 = vshrl.u32 %v1506, 7
        %v1508 = vsub.s32 2, %v1507
        %v1509 = vrot.slane %v1496, %v1508
        %v1510 = vlaneseq
        %v1511 = vshrl.u32 %v1510, 7
        %v1512 = vsub.s32 3, %v1511
        %v1513 = vrot.slane %v1496, %v1512
        %1518 = vrot.lane.b32.xlu0 %v1501, 17
        %v1519 = vpop.permute.xlu0 %1518
        %1520 = vrot.lane.b32.xlu0 %v1505, 17
        %v1521 = vpop.permute.xlu0 %1520
        %1522 = vrot.lane.b32.xlu0 %v1509, 17
        %v1523 = vpop.permute.xlu0 %1522
        %1524 = vrot.lane.b32.xlu0 %v1513, 17
        %v1525 = vpop.permute.xlu0 %1524
        %v1526 = vsel %vm282, %v1523, %v1525
        %v1527 = vsel %vm282, %v1521, %v1523
        %v1528 = vsel %vm282, %v1519, %v1521
        %v1529 = vsel %vm282, %v1525, %v1519
        %1530 = vrot.lane.b32.xlu0 %v1501, 16
        %v1531 = vpop.permute.xlu0 %1530
        %1532 = vrot.lane.b32.xlu0 %v1505, 16
        %v1533 = vpop.permute.xlu0 %1532
        %1534 = vrot.lane.b32.xlu0 %v1509, 16
        %v1535 = vpop.permute.xlu0 %1534
        %1536 = vrot.lane.b32.xlu0 %v1513, 16
        %v1537 = vpop.permute.xlu0 %1536
        %v1538 = vsel %vm295, %v1535, %v1537
        %v1539 = vsel %vm295, %v1533, %v1535
        %v1540 = vsel %vm295, %v1531, %v1533
        %v1541 = vsel %vm295, %v1537, %v1531
        %1542 = vrot.lane.b32.xlu0 %v1501, 15
        %v1543 = vpop.permute.xlu0 %1542
        %1544 = vrot.lane.b32.xlu0 %v1505, 15
        %v1545 = vpop.permute.xlu0 %1544
        %1546 = vrot.lane.b32.xlu0 %v1509, 15
        %v1547 = vpop.permute.xlu0 %1546
        %1548 = vrot.lane.b32.xlu0 %v1513, 15
        %v1549 = vpop.permute.xlu0 %1548
        %v1550 = vsel %vm308, %v1547, %v1549
        %v1551 = vsel %vm308, %v1545, %v1547
        %v1552 = vsel %vm308, %v1543, %v1545
        %v1553 = vsel %vm308, %v1549, %v1543
        %1554 = vrot.lane.b32.xlu0 %v1501, 1
        %v1555 = vpop.permute.xlu0 %1554
        %1556 = vrot.lane.b32.xlu0 %v1505, 1
        %v1557 = vpop.permute.xlu0 %1556
        %1558 = vrot.lane.b32.xlu0 %v1509, 1
        %v1559 = vpop.permute.xlu0 %1558
        %1560 = vrot.lane.b32.xlu0 %v1513, 1
        %v1561 = vpop.permute.xlu0 %1560
        %v1562 = vsel %vm321, %v1559, %v1561
        %v1563 = vsel %vm321, %v1557, %v1559
        %v1564 = vsel %vm321, %v1555, %v1557
        %v1565 = vsel %vm321, %v1561, %v1555
        %1566 = vrot.lane.b32.xlu0 %v1501, 127
        %v1567 = vpop.permute.xlu0 %1566
        %1568 = vrot.lane.b32.xlu0 %v1505, 127
        %v1569 = vpop.permute.xlu0 %1568
        %1570 = vrot.lane.b32.xlu0 %v1509, 127
        %v1571 = vpop.permute.xlu0 %1570
        %1572 = vrot.lane.b32.xlu0 %v1513, 127
        %v1573 = vpop.permute.xlu0 %1572
        %v1574 = vsel %vm334, %v1571, %v1573
        %v1575 = vsel %vm334, %v1569, %v1571
        %v1576 = vsel %vm334, %v1567, %v1569
        %v1577 = vsel %vm334, %v1573, %v1567
        %1578 = vrot.lane.b32.xlu0 %v1501, 113
        %v1579 = vpop.permute.xlu0 %1578
        %1580 = vrot.lane.b32.xlu0 %v1505, 113
        %v1581 = vpop.permute.xlu0 %1580
        %1582 = vrot.lane.b32.xlu0 %v1509, 113
        %v1583 = vpop.permute.xlu0 %1582
        %1584 = vrot.lane.b32.xlu0 %v1513, 113
        %v1585 = vpop.permute.xlu0 %1584
        %v1586 = vsel %vm347, %v1583, %v1585
        %v1587 = vsel %vm347, %v1581, %v1583
        %v1588 = vsel %vm347, %v1579, %v1581
        %v1589 = vsel %vm347, %v1585, %v1579
        %1590 = vrot.lane.b32.xlu0 %v1501, 112
        %v1591 = vpop.permute.xlu0 %1590
        %1592 = vrot.lane.b32.xlu0 %v1505, 112
        %v1593 = vpop.permute.xlu0 %1592
        %1594 = vrot.lane.b32.xlu0 %v1509, 112
        %v1595 = vpop.permute.xlu0 %1594
        %1596 = vrot.lane.b32.xlu0 %v1513, 112
        %v1597 = vpop.permute.xlu0 %1596
        %v1598 = vsel %vm360, %v1595, %v1597
        %v1599 = vsel %vm360, %v1593, %v1595
        %v1600 = vsel %vm360, %v1591, %v1593
        %v1601 = vsel %vm360, %v1597, %v1591
        %1602 = vrot.lane.b32.xlu0 %v1501, 111
        %v1603 = vpop.permute.xlu0 %1602
        %1604 = vrot.lane.b32.xlu0 %v1505, 111
        %v1605 = vpop.permute.xlu0 %1604
        %1606 = vrot.lane.b32.xlu0 %v1509, 111
        %v1607 = vpop.permute.xlu0 %1606
        %1608 = vrot.lane.b32.xlu0 %v1513, 111
        %v1609 = vpop.permute.xlu0 %1608
        %v1610 = vsel %vm373, %v1607, %v1609
        %v1611 = vsel %vm373, %v1605, %v1607
        %v1612 = vsel %vm373, %v1603, %v1605
        %v1613 = vsel %vm373, %v1609, %v1603
        %v1618 = vrot.slane %v1541, 7
        %v1619 = vrot.slane %v1540, 7
        %v1620 = vrot.slane %v1539, 7
        %v1621 = vrot.slane %v1538, 7
        %v1630 = vrot.slane %v1553, 6
        %v1631 = vrot.slane %v1552, 6
        %v1632 = vrot.slane %v1551, 6
        %v1633 = vrot.slane %v1550, 6
        %v1642 = vrot.slane %v1565, 5
        %v1643 = vrot.slane %v1564, 5
        %v1644 = vrot.slane %v1563, 5
        %v1645 = vrot.slane %v1562, 5
        %v1654 = vrot.slane %v1576, 3
        %v1655 = vrot.slane %v1575, 3
        %v1656 = vrot.slane %v1574, 3
        %v1657 = vrot.slane %v1577, 3
        %v1666 = vrot.slane %v1588, 2
        %v1667 = vrot.slane %v1587, 2
        %v1668 = vrot.slane %v1586, 2
        %v1669 = vrot.slane %v1589, 2
        %v1678 = vrot.slane %v1600, 1
        %v1679 = vrot.slane %v1599, 1
        %v1680 = vrot.slane %v1598, 1
        %v1681 = vrot.slane %v1601, 1
        %v1686 = vsel %vm450, %v1529, %v1618
        %v1687 = vsel %vm450, %v1528, %v1619
        %v1688 = vsel %vm450, %v1527, %v1620
        %v1689 = vsel %vm450, %v1526, %v1621
        %v1690 = vsel %vm455, %v1686, %v1630
        %v1691 = vsel %vm455, %v1687, %v1631
        %v1692 = vsel %vm455, %v1688, %v1632
        %v1693 = vsel %vm455, %v1689, %v1633
        %v1694 = vsel %vm460, %v1690, %v1642
        %v1695 = vsel %vm460, %v1691, %v1643
        %v1696 = vsel %vm460, %v1692, %v1644
        %v1697 = vsel %vm460, %v1693, %v1645
        %v1698 = vsel %vm465, %v1694, %v1501
        %v1699 = vsel %vm465, %v1695, %v1505
        %v1700 = vsel %vm465, %v1696, %v1509
        %v1701 = vsel %vm465, %v1697, %v1513
        %v1702 = vsel %vm470, %v1698, %v1654
        %v1703 = vsel %vm470, %v1699, %v1655
        %v1704 = vsel %vm470, %v1700, %v1656
        %v1705 = vsel %vm470, %v1701, %v1657
        %v1706 = vsel %vm475, %v1702, %v1666
        %v1707 = vsel %vm475, %v1703, %v1667
        %v1708 = vsel %vm475, %v1704, %v1668
        %v1709 = vsel %vm475, %v1705, %v1669
        %v1710 = vsel %vm480, %v1706, %v1678
        %v1711 = vsel %vm480, %v1707, %v1679
        %v1712 = vsel %vm480, %v1708, %v1680
        %v1713 = vsel %vm480, %v1709, %v1681
        %v1714 = vpack.c.bf16 %v1612, %v1710
        %v1715 = vpack.c.bf16 %v1611, %v1711
        %v1716 = vpack.c.bf16 %v1610, %v1712
        %v1717 = vpack.c.bf16 %v1613, %v1713
        %v1718 = vld [vmem:[#allocation4] sm:$0xff]
        %v1719 = vld [vmem:[#allocation4 + $0x8] sm:$0xff]
        %v1720 = vld [vmem:[#allocation4 + $0x10] sm:$0x11]
        %v1721 = vld [vmem:[#allocation4 + $0x18] sm:$0x11]
        %v1726 = vunpack.c.l.b16 %v1718
        %v1727 = vunpack.c.h.b16 %v1718
        %v1728 = vunpack.c.l.b16 %v1719
        %v1729 = vunpack.c.h.b16 %v1719
        %v1730 = vunpack.c.l.b16 %v1720
        %v1731 = vunpack.c.h.b16 %v1720
        %v1732 = vunpack.c.l.b16 %v1721
        %v1733 = vunpack.c.h.b16 %v1721
        %v1734 = vpack.c.b16 %v1730, %v1726
        %v1735 = vpack.c.b16 %v1731, %v1727
        %v1736 = vpack.c.b16 %v1732, %v1728
        %v1737 = vpack.c.b16 %v1733, %v1729
        %v1742 = vmul.bf16 %v1714, %v1734
        %v1743 = vmul.bf16 %v1715, %v1735
        %v1744 = vmul.bf16 %v1716, %v1736
        %v1745 = vmul.bf16 %v1717, %v1737
        %v1746 = vld [vmem:[%s3] sm:$0xf]
        %v1747 = vld [vmem:[%s3 + $0x4] sm:$0xf]
        %v1748 = vld [vmem:[%s3 + $0x8] sm:$0xf]
        %v1749 = vld [vmem:[%s3 + $0xc] sm:$0xf]
        %v1754 = vunpack.c.l.b16 %v1746
        %v1755 = vunpack.c.l.b16 %v1747
        %v1756 = vunpack.c.l.b16 %v1748
        %v1757 = vunpack.c.l.b16 %v1749
        %v1758 = vpack.c.b16 %v1755, %v1754
        %v1759 = vpack.c.b16 %v1757, %v1756
        %v1761 = vsel %vm531, %v1758, 0
        %v1764 = vsel %vm531, %v1759, 0
        %v1767 = vand.u32 %v1742, %v539
        %v1770 = vand.u32 %v1743, %v539
        %v1773 = vand.u32 %v1744, %v539
        %v1776 = vand.u32 %v1745, %v539
        %1778 = vmatprep.subr.bf16.mxu0 %v1770
        %1779 = vmatpush1.bf16.msra.mxu0 %v1767
        %1780 = vmatprep.subr.bf16.mxu0 0
        %1781 = vmatpush1.bf16.msra.mxu0 0
        %1782 = vmatprep.subr.bf16.mxu0 0
        %1783 = vmatpush1.bf16.msra.mxu0 0
        %1784 = vmatprep.subr.bf16.mxu0 0
        %1785 = vmatpush1.bf16.msra.mxu0 0
        %1786 = vmatprep.subr.bf16.mxu0 0
        %1787 = vmatpush1.bf16.msra.mxu0 0
        %1788 = vmatprep.subr.bf16.mxu0 0
        %1789 = vmatpush1.bf16.msra.mxu0 0
        %1790 = vmatprep.subr.bf16.mxu0 0
        %1791 = vmatpush1.bf16.msra.mxu0 0
        %1792 = vmatprep.subr.bf16.mxu0 0
        %1793 = vmatpush1.bf16.msra.mxu0 0
        %1794 = vmatprep.subr.bf16.mxu0 0
        %1795 = vmatpush1.bf16.msra.mxu0 0
        %1796 = vmatprep.subr.bf16.mxu0 0
        %1797 = vmatpush1.bf16.msra.mxu0 0
        %1798 = vmatprep.subr.bf16.mxu0 0
        %1799 = vmatpush1.bf16.msra.mxu0 0
        %1800 = vmatprep.subr.bf16.mxu0 0
        %1801 = vmatpush1.bf16.msra.mxu0 0
        %1802 = vmatprep.subr.bf16.mxu0 0
        %1803 = vmatpush1.bf16.msra.mxu0 0
        %1804 = vmatprep.subr.bf16.mxu0 0
        %1805 = vmatpush1.bf16.msra.mxu0 0
        %1806 = vmatprep.subr.bf16.mxu0 0
        %1807 = vmatpush1.bf16.msra.mxu0 0
        %1808 = vmatprep.subr.bf16.mxu0 0
        %1809 = vmatpush1.bf16.msra.mxu0 0
        %1810 = vmatprep.mubr.bf16.mxu0 0
        %1811 = vmatmul.mubr.bf16.gmra.mrb[0].mxu0 %v1761
        %v1812 = vpop.f32.mrb[0].mxu0
        %v1813 = vadd.f32 0.0, %v1812
        %v1814 = vpop.f32.mrb[0].mxu0
        %v1815 = vadd.f32 0.0, %v1814
        %v1816 = vpop.f32.mrb[0].mxu0
        %v1817 = vadd.f32 0.0, %v1816
        %v1818 = vpop.f32.mrb[0].mxu0
        %v1819 = vadd.f32 0.0, %v1818
        %1820 = vmatprep.mubr.bf16.mxu0 0
        %1821 = vmatmul.mubr.bf16.gmra.mrb[0].mxu0 %v1764
        %v1822 = vpop.f32.mrb[0].mxu0
        %v1823 = vadd.f32 0.0, %v1822
        %v1824 = vpop.f32.mrb[0].mxu0
        %v1825 = vadd.f32 0.0, %v1824
        %v1826 = vpop.f32.mrb[0].mxu0
        %v1827 = vadd.f32 0.0, %v1826
        %v1828 = vpop.f32.mrb[0].mxu0
        %v1829 = vadd.f32 0.0, %v1828
        %1830 = vdwg.mxu0
        %1831 = vmatprep.subr.bf16.mxu0 %v1776
        %1832 = vmatpush1.bf16.msra.mxu0 %v1773
        %1833 = vmatprep.subr.bf16.mxu0 0
        %1834 = vmatpush1.bf16.msra.mxu0 0
        %1835 = vmatprep.subr.bf16.mxu0 0
        %1836 = vmatpush1.bf16.msra.mxu0 0
        %1837 = vmatprep.subr.bf16.mxu0 0
        %1838 = vmatpush1.bf16.msra.mxu0 0
        %1839 = vmatprep.subr.bf16.mxu0 0
        %1840 = vmatpush1.bf16.msra.mxu0 0
        %1841 = vmatprep.subr.bf16.mxu0 0
        %1842 = vmatpush1.bf16.msra.mxu0 0
        %1843 = vmatprep.subr.bf16.mxu0 0
        %1844 = vmatpush1.bf16.msra.mxu0 0
        %1845 = vmatprep.subr.bf16.mxu0 0
        %1846 = vmatpush1.bf16.msra.mxu0 0
        %1847 = vmatprep.subr.bf16.mxu0 0
        %1848 = vmatpush1.bf16.msra.mxu0 0
        %1849 = vmatprep.subr.bf16.mxu0 0
        %1850 = vmatpush1.bf16.msra.mxu0 0
        %1851 = vmatprep.subr.bf16.mxu0 0
        %1852 = vmatpush1.bf16.msra.mxu0 0
        %1853 = vmatprep.subr.bf16.mxu0 0
        %1854 = vmatpush1.bf16.msra.mxu0 0
        %1855 = vmatprep.subr.bf16.mxu0 0
        %1856 = vmatpush1.bf16.msra.mxu0 0
        %1857 = vmatprep.subr.bf16.mxu0 0
        %1858 = vmatpush1.bf16.msra.mxu0 0
        %1859 = vmatprep.subr.bf16.mxu0 0
        %1860 = vmatpush1.bf16.msra.mxu0 0
        %1861 = vmatprep.subr.bf16.mxu0 0
        %1862 = vmatpush1.bf16.msra.mxu0 0
        %1863 = vmatprep.mubr.bf16.mxu0 0
        %1864 = vmatmul.mubr.bf16.gmra.mrb[0].mxu0 %v1761
        %v1865 = vpop.f32.mrb[0].mxu0
        %v1866 = vadd.f32 0.0, %v1865
        %v1867 = vpop.f32.mrb[0].mxu0
        %v1868 = vadd.f32 0.0, %v1867
        %v1869 = vpop.f32.mrb[0].mxu0
        %v1870 = vadd.f32 0.0, %v1869
        %v1871 = vpop.f32.mrb[0].mxu0
        %v1872 = vadd.f32 0.0, %v1871
        %1873 = vmatprep.mubr.bf16.mxu0 0
        %1874 = vmatmul.mubr.bf16.gmra.mrb[0].mxu0 %v1764
        %v1875 = vpop.f32.mrb[0].mxu0
        %v1876 = vadd.f32 0.0, %v1875
        %v1877 = vpop.f32.mrb[0].mxu0
        %v1878 = vadd.f32 0.0, %v1877
        %v1879 = vpop.f32.mrb[0].mxu0
        %v1880 = vadd.f32 0.0, %v1879
        %v1881 = vpop.f32.mrb[0].mxu0
        %v1882 = vadd.f32 0.0, %v1881
        %1883 = vdwg.mxu0
        %s1884 = scalar_lea.vmem %s240, 384
        %1885 = vst [vmem:[%s1884] sm:$0xff] %v1813
        %1886 = vst [vmem:[%s1884 + $0x8] sm:$0xff] %v1815
        %1887 = vst [vmem:[%s1884 + $0x10] sm:$0xff] %v1817
        %1888 = vst [vmem:[%s1884 + $0x18] sm:$0xff] %v1819
        %1889 = vst [vmem:[%s1884 + $0x20] sm:$0xff] %v1823
        %1890 = vst [vmem:[%s1884 + $0x28] sm:$0xff] %v1825
        %1891 = vst [vmem:[%s1884 + $0x30] sm:$0xff] %v1827
        %1892 = vst [vmem:[%s1884 + $0x38] sm:$0xff] %v1829
        %s1893 = scalar_lea.vmem %s240, 448
        %1894 = vst [vmem:[%s1893] sm:$0xff] %v1866
        %1895 = vst [vmem:[%s1893 + $0x8] sm:$0xff] %v1868
        %1896 = vst [vmem:[%s1893 + $0x10] sm:$0xff] %v1870
        %1897 = vst [vmem:[%s1893 + $0x18] sm:$0xff] %v1872
        %1898 = vst [vmem:[%s1893 + $0x20] sm:$0xff] %v1876
        %1899 = vst [vmem:[%s1893 + $0x28] sm:$0xff] %v1878
        %1900 = vst [vmem:[%s1893 + $0x30] sm:$0xff] %v1880
        %1901 = vst [vmem:[%s1893 + $0x38] sm:$0xff] %v1882
        %s1902 = smul.u32 8, %s19
        %p1903 = scmp.lt.s32.totalorder %s1902, 15
        %s1904 = scalar_select %p1903, %s1902, 15
        %s1905 = smul.addr %s1904, 8
        %s1906 = smul.addr %s1905, 8
        %s1907 = scalar_lea.vmem %s5, %s1906
        // Predicated region
        $region45: #{dense_inception_stem_forward.1} parent=39 // pred_check
          %p1908 = pneg %p147
        $region46: #{dense_inception_stem_forward.1} parent=39 // pred_check_branch
          %1910 = sbr.rel (%p1908) target = $region48
        $region47: #{dense_inception_stem_forward.1} parent=39 // pred_region
          %s1911 = smul.u32 8, %s19
        $region48: #{dense_inception_stem_forward.1} parent=39 // pred_fallthru
          _
      $region40: #{dense_inception_stem_forward.1} parent=5 // pred_fallthru
        _
      %p1912 = scmp.le.s32.totalorder 2, %s14
      // Predicated region
      $region49: #{dense_inception_stem_forward.1} parent=5 // pred_check
        %p1913 = pneg %p1912
      $region50: #{dense_inception_stem_forward.1} parent=5 // pred_check_branch
        %1915 = sbr.rel (%p1913) target = $region52
      $region51: #{dense_inception_stem_forward.1} parent=5 // pred_region
        %s1916 = ssub.s32 %s14, 2
        // Predicated region
        $region53: #{dense_inception_stem_forward.1} parent=51 // pred_check
          %p1917 = pneg %p153
        $region54: #{dense_inception_stem_forward.1} parent=51 // pred_check_branch
          %1919 = sbr.rel (%p1917) target = $region56
        $region55: #{dense_inception_stem_forward.1} parent=51 // pred_region
          %s1920 = smul.u32 8, %s20
          %p1921 = scmp.lt.s32.totalorder %s1920, 15
          %s1922 = scalar_select %p1921, %s1920, 15
          %s1923 = smul.addr %s1922, 8
          %s1924 = smul.addr %s1923, 8
          %s1925 = scalar_lea.vmem %s5, %s1924
        $region56: #{dense_inception_stem_forward.1} parent=51 // pred_fallthru
          _
      $region52: #{dense_inception_stem_forward.1} parent=5 // pred_fallthru
        _
    $region6: #{dense_inception_stem_forward.1} parent=1 // loop_footer
      %s18 = sadd.s32 1, %s14
    $region7: #{dense_inception_stem_forward.1} parent=1 // loop_footer_branch
      %13 = sbr.rel target = $region3
    $region8: #{dense_inception_stem_forward.1} parent=1 // loop_exit
      _
    %1926 = vsyncpa [#allocation5], 1
    %s1927 = scalar_lea.sflag [#allocation5], 1
    %1928 = vsyncpa %s1927, 1

</llo_original>
